<compile_context>
chip_gen: v7x
topology: tpu7x:2x2x1
jax: 0.10.0
libtpu: 0.0.40
codegen_flags: <defaults>
</compile_context>

<pallas_src>
import math
import jax
import jax.numpy as jnp
from jax.experimental import pallas as pl
from jax.experimental.pallas import tpu as pltpu

NUM_EXPERTS = 5
KSIZE = 5


# ---------------------------------------------------------------------------
# In-kernel helpers (only called inside the Pallas kernel)
# ---------------------------------------------------------------------------
def _mish(x):
    # mish(x) = x * tanh(softplus(x)) = x * ((1+e^x)^2 - 1) / ((1+e^x)^2 + 1)
    # one exp + one (approx) reciprocal instead of exp + log1p + tanh.
    xc = jnp.minimum(x, 20.0)                 # overflow guard; tanh(sp(x)) == 1 for x > 20
    e = jnp.exp(xc)
    p = (1.0 + e) * (1.0 + e)
    t = (p - 1.0) * pl.reciprocal(p + 1.0, approx=True)
    return jnp.where(x > 20.0, x, x * t)


def _instnorm_mish(y):
    # y: (N, L, C) channels-last; InstanceNorm1d over spatial dim L (axis 1).
    mean = jnp.mean(y, axis=1, keepdims=True)
    var = jnp.mean((y - mean) ** 2, axis=1, keepdims=True)
    return _mish((y - mean) * jax.lax.rsqrt(var + 1e-5))


# ---------------------------------------------------------------------------
# Fused kernel: MoDEConv1 -> MoDEConv2 -> conv_down, whole batch in one step
# ---------------------------------------------------------------------------
def _encoder_block_kernel(x_ref, w1_ref, w2_ref, wd0_ref, wd1_ref,
                          down_ref, skip_ref, xwin1, xwin2):
    # x_ref   : (N, L, Cin)          input, channels-last
    # w1_ref  : (N, K*Cin,  Cout)    per-sample routed weights of conv1 (k-major, i-minor)
    # w2_ref  : (N, K*Cout, Cout)    per-sample routed weights of conv2
    # wd0_ref : (O, L)               conv_down tap 0   (O == Cout, L == Cout)
    # wd1_ref : (O, L)               conv_down tap 1
    # down_ref: (N, O, S2)           x_down (PyTorch Conv1d layout)
    # skip_ref: (N, L, Cout)         x_skip (channels-last)
    # xwin1   : VMEM (N, L, K*Cin)   im2col scratch for conv1
    # xwin2   : VMEM (N, L, K*Cout)  im2col scratch for conv2
    N, L, Cin = x_ref.shape
    Cout = w1_ref.shape[2]
    O = wd0_ref.shape[0]
    S2 = down_ref.shape[2]

    # ---------------- conv1: causal im2col + ONE batched MXU matmul ----------
    # xwin[n, l, k*Cin + i] = x[n, l + k - (K-1), i]  (zero where out of range)
    xwin1[...] = jnp.zeros_like(xwin1)
    for k in range(KSIZE):
        pad = KSIZE - 1 - k
        if pad < L:
            xwin1[:, pad:, k * Cin:(k + 1) * Cin] = x_ref[:, :L - pad, :]
    h = jnp.einsum('nlj,njo->nlo', xwin1[...], w1_ref[...],
                   preferred_element_type=jnp.float32)
    h = _instnorm_mish(h)                                  # (N, L, Cout)

    # ---------------- conv2 --------------------------------------------------
    xwin2[...] = jnp.zeros_like(xwin2)
    for k in range(KSIZE):
        pad = KSIZE - 1 - k
        if pad < L:
            xwin2[:, pad:, k * Cout:(k + 1) * Cout] = h[:, :L - pad, :]
    xs = jnp.einsum('nlj,njo->nlo', xwin2[...], w2_ref[...],
                    preferred_element_type=jnp.float32)
    xs = _instnorm_mish(xs)                                # (N, L, Cout) == x_skip
    skip_ref[...] = xs.astype(skip_ref.dtype)

    # ---------------- conv_down: Conv1d(k=2, s=2) on (N, L-as-chan, Cout-as-spatial)
    # y[n, o, s] = sum_l W[o, l, 0] * xs[n, l, 2s] + W[o, l, 1] * xs[n, l, 2s+1]
    # Stride-2 even/odd split done in-kernel with 0/1 selection matmuls.
    C = Cout
    c_idx = jax.lax.broadcasted_iota(jnp.int32, (C, S2), 0)
    s_idx = jax.lax.broadcasted_iota(jnp.int32, (C, S2), 1)
    sel_e = (c_idx == 2 * s_idx).astype(jnp.float32)       # (C, S2)
    sel_o = (c_idx == 2 * s_idx + 1).astype(jnp.float32)   # (C, S2)
    w0 = wd0_ref[...]
    w1 = wd1_ref[...]

    ys = []
    for n in range(N):                                     # N static & small; plain 2-D dots
        a = xs[n]                                          # (L, C)
        pe = jnp.dot(a, sel_e, preferred_element_type=jnp.float32)   # (L, S2) even cols
        po = jnp.dot(a, sel_o, preferred_element_type=jnp.float32)   # (L, S2) odd cols
        y_n = (jnp.dot(w0, pe, preferred_element_type=jnp.float32)
               + jnp.dot(w1, po, preferred_element_type=jnp.float32))  # (O, S2)
        ys.append(y_n)
    y = jnp.stack(ys, axis=0)                              # (N, O, S2)

    # BatchNorm1d (training-mode batch stats), channels = axis 1
    mean = jnp.mean(y, axis=(0, 2), keepdims=True)
    var = jnp.mean((y - mean) ** 2, axis=(0, 2), keepdims=True)
    yn = (y - mean) * jax.lax.rsqrt(var + 1e-5)
    down_ref[...] = _mish(yn).astype(down_ref.dtype)


# ---------------------------------------------------------------------------
# Wrapper: routing (hoisted out of the kernel) + the single fused pallas_call
# ---------------------------------------------------------------------------
def _build_expert_bank(p):
    # 5 expert kernels, left-zero-padded to K=5, arranged as (E, K, Cin, Cout).
    e5 = p['conv5']                                                    # (Co, Ci, 5)
    e3 = jnp.pad(p['conv3'], ((0, 0), (0, 0), (2, 0)))                 # (Co, Ci, 5)
    e1 = jnp.pad(p['conv1'], ((0, 0), (0, 0), (4, 0)))                 # (Co, Ci, 5)
    pool3 = jnp.ones((3,), jnp.float32) / 3.0
    pool5 = jnp.ones((5,), jnp.float32) / 5.0
    a3 = jnp.pad(p['avg3_conv'] * pool3[None, None, :], ((0, 0), (0, 0), (2, 0)))
    a5 = p['avg5_conv'] * pool5[None, None, :]
    bank = jnp.stack([e5, e3, e1, a3, a5], axis=0)                     # (E, Co, Ci, K)
    return jnp.transpose(bank, (0, 3, 2, 1))                           # (E, K, Ci, Co)


def _routed_weights(t, p):
    # Per-sample routed conv weights, flattened to (N, K*Cin, Cout), k-major / i-minor
    # to match the in-kernel im2col layout.
    Co, Ci, _ = p['conv5'].shape
    N = t.shape[0]
    g = t @ p['gate_w'].T + p['gate_b']
    g = jax.nn.softmax(g.reshape(N, NUM_EXPERTS, Co), axis=1)          # (N, E, Co)
    bank = _build_expert_bank(p)                                       # (E, K, Ci, Co)
    w = jnp.einsum('neo,ekio->nkio', g, bank)                          # (N, K, Ci, Co)
    return w.reshape(N, KSIZE * Ci, Co)


def mode_encoder_block_forward(x, t, params):
    # x: (N, L, Cin) channels-last, t: (N, num_tasks)
    N, L, Cin = x.shape
    Cout = params['conv1']['conv5'].shape[0]
    Wd = params['down_w']                                              # (O, L, 2)
    assert Wd.shape[1] == L, "conv_down requires L == out_chan (inherited from reference)"

    w1 = _routed_weights(t, params['conv1'])                           # (N, K*Cin,  Cout)
    w2 = _routed_weights(t, params['conv2'])                           # (N, K*Cout, Cout)
    wd0 = Wd[:, :, 0]                                                  # (O, L)
    wd1 = Wd[:, :, 1]                                                  # (O, L)
    O = Wd.shape[0]
    S2 = Cout // 2

    x_down, x_skip = pl.pallas_call(
        _encoder_block_kernel,
        out_shape=(jax.ShapeDtypeStruct((N, O, S2), jnp.float32),      # x_down
                   jax.ShapeDtypeStruct((N, L, Cout), jnp.float32)),   # x_skip
        grid=(1,),
        in_specs=[
            pl.BlockSpec((N, L, Cin), lambda i: (0, 0, 0)),
            pl.BlockSpec((N, KSIZE * Cin, Cout), lambda i: (0, 0, 0)),
            pl.BlockSpec((N, KSIZE * Cout, Cout), lambda i: (0, 0, 0)),
            pl.BlockSpec((O, L), lambda i: (0, 0)),
            pl.BlockSpec((O, L), lambda i: (0, 0)),
        ],
        out_specs=(
            pl.BlockSpec((N, O, S2), lambda i: (0, 0, 0)),
            pl.BlockSpec((N, L, Cout), lambda i: (0, 0, 0)),
        ),
        scratch_shapes=[
            pltpu.VMEM((N, L, KSIZE * Cin), jnp.float32),
            pltpu.VMEM((N, L, KSIZE * Cout), jnp.float32),
        ],
        compiler_params=pltpu.CompilerParams(dimension_semantics=("arbitrary",)),
    )(x, w1, w2, wd0, wd1)
    return x_down, x_skip


# ---------------------------------------------------------------------------
# Parameter init (matches PyTorch init distributions at a coarse level)
# ---------------------------------------------------------------------------
def _uniform(key, shape, bound):
    return jax.random.uniform(key, shape, jnp.float32, -bound, bound)


def init_modeconv_params(key, Ci, Co, T):
    ks = jax.random.split(key, 7)
    def cbound(Kk):  # kaiming_uniform a=sqrt(5), mode='fan_out' -> bound = 1/sqrt(Co*Kk)
        return math.sqrt(1.0 / (Co * Kk))
    lb = 1.0 / math.sqrt(T)
    return {
        'conv5': _uniform(ks[0], (Co, Ci, 5), cbound(5)),
        'conv3': _uniform(ks[1], (Co, Ci, 3), cbound(3)),
        'conv1': _uniform(ks[2], (Co, Ci, 1), cbound(1)),
        'avg3_conv': _uniform(ks[3], (Co, Ci, 1), cbound(1)),
        'avg5_conv': _uniform(ks[4], (Co, Ci, 1), cbound(1)),
        'gate_w': _uniform(ks[5], (NUM_EXPERTS * Co, T), lb),
        'gate_b': _uniform(ks[6], (NUM_EXPERTS * Co,), lb),
    }


def init_encoder_params(key, Cin, Cout, T):
    k1, k2, k3 = jax.random.split(key, 3)
    return {
        'conv1': init_modeconv_params(k1, Cin, Cout, T),
        'conv2': init_modeconv_params(k2, Cout, Cout, T),
        'down_w': _uniform(k3, (Cout, Cout, 2), 1.0 / math.sqrt(Cout * 2)),
    }


if __name__ == "__main__":
    # Small shapes consistent with the module; L must equal out_chan for conv_down
    # (a constraint of the reference module's own layout).
    N, L, Cin, Cout, T = 2, 8, 4, 8, 3

    key = jax.random.PRNGKey(0)
    kx, kt, kp = jax.random.split(key, 3)
    x = jax.random.normal(kx, (N, L, Cin), jnp.float32)
    t = jax.random.normal(kt, (N, T), jnp.float32)
    params = init_encoder_params(kp, Cin, Cout, T)

    fwd = jax.jit(mode_encoder_block_forward)
    x_down, x_skip = fwd(x, t, params)
    jax.block_until_ready((x_down, x_skip))

    assert x_skip.shape == (N, L, Cout)
    assert x_down.shape == (N, Cout, Cout // 2)
    assert bool(jnp.all(jnp.isfinite(x_down))) and bool(jnp.all(jnp.isfinite(x_skip)))
    print("KERNEL_OK")
</pallas_src>

<mosaic_0001>
module attributes {stable_mosaic.version = 11 : i64} {
  func.func @_encoder_block_kernel(%arg0: i32, %arg1: memref<2x8x4xf32, #tpu.memory_space<vmem>>, %arg2: memref<2x20x8xf32, #tpu.memory_space<vmem>>, %arg3: memref<2x40x8xf32, #tpu.memory_space<vmem>>, %arg4: memref<8x8xf32, #tpu.memory_space<vmem>>, %arg5: memref<8x8xf32, #tpu.memory_space<vmem>>, %arg6: memref<2x8x4xf32, #tpu.memory_space<vmem>>, %arg7: memref<2x8x8xf32, #tpu.memory_space<vmem>>, %arg8: memref<2x8x20xf32, #tpu.memory_space<vmem>>, %arg9: memref<2x8x40xf32, #tpu.memory_space<vmem>>) attributes {dimension_semantics = [#tpu.dimension_semantics<arbitrary>], iteration_bounds = array<i64: 1>, scalar_prefetch = 0 : i64, scratch_operands = 2 : i64, tpu.core_type = #tpu.core_type<tc>, window_params = [{pipeline_mode = #tpu.pipeline_mode<synchronous>, transform_indices = @transform_0, window_bounds = array<i64: 2, 8, 4>}, {pipeline_mode = #tpu.pipeline_mode<synchronous>, transform_indices = @transform_1, window_bounds = array<i64: 2, 20, 8>}, {pipeline_mode = #tpu.pipeline_mode<synchronous>, transform_indices = @transform_2, window_bounds = array<i64: 2, 40, 8>}, {pipeline_mode = #tpu.pipeline_mode<synchronous>, transform_indices = @transform_3, window_bounds = array<i64: 8, 8>}, {pipeline_mode = #tpu.pipeline_mode<synchronous>, transform_indices = @transform_4, window_bounds = array<i64: 8, 8>}, {pipeline_mode = #tpu.pipeline_mode<synchronous>, transform_indices = @transform_5, window_bounds = array<i64: 2, 8, 4>}, {pipeline_mode = #tpu.pipeline_mode<synchronous>, transform_indices = @transform_6, window_bounds = array<i64: 2, 8, 8>}]} {
    %cst = arith.constant 0.000000e+00 : f32
    %0 = vector.broadcast %cst : f32 to vector<2x8x20xf32>
    %c0 = arith.constant 0 : index
    %c0_0 = arith.constant 0 : index
    %c0_1 = arith.constant 0 : index
    %1 = vector.load %arg8[%c0, %c0_0, %c0_1] : memref<2x8x20xf32, #tpu.memory_space<vmem>>, vector<2x8x20xf32>
    tpu.vector_store %arg8[%c0, %c0_0, %c0_1], %0 {strides = array<i32>} : memref<2x8x20xf32, #tpu.memory_space<vmem>>, vector<2x8x20xf32>,
    %c0_2 = arith.constant 0 : index
    %c0_3 = arith.constant 0 : index
    %c0_4 = arith.constant 0 : index
    %2 = vector.load %arg1[%c0_2, %c0_3, %c0_4] : memref<2x8x4xf32, #tpu.memory_space<vmem>>, vector<2x4x4xf32>
    %c0_5 = arith.constant 0 : index
    %c4 = arith.constant 4 : index
    %c0_6 = arith.constant 0 : index
    %3 = vector.load %arg8[%c0_5, %c4, %c0_6] : memref<2x8x20xf32, #tpu.memory_space<vmem>>, vector<2x4x4xf32>
    tpu.vector_store %arg8[%c0_5, %c4, %c0_6], %2 {strides = array<i32>} : memref<2x8x20xf32, #tpu.memory_space<vmem>>, vector<2x4x4xf32>,
    %c0_7 = arith.constant 0 : index
    %c0_8 = arith.constant 0 : index
    %c0_9 = arith.constant 0 : index
    %4 = vector.load %arg1[%c0_7, %c0_8, %c0_9] : memref<2x8x4xf32, #tpu.memory_space<vmem>>, vector<2x5x4xf32>
    %c0_10 = arith.constant 0 : index
    %c3 = arith.constant 3 : index
    %c4_11 = arith.constant 4 : index
    %5 = vector.load %arg8[%c0_10, %c3, %c4_11] : memref<2x8x20xf32, #tpu.memory_space<vmem>>, vector<2x5x4xf32>
    tpu.vector_store %arg8[%c0_10, %c3, %c4_11], %4 {strides = array<i32>} : memref<2x8x20xf32, #tpu.memory_space<vmem>>, vector<2x5x4xf32>,
    %c0_12 = arith.constant 0 : index
    %c0_13 = arith.constant 0 : index
    %c0_14 = arith.constant 0 : index
    %6 = vector.load %arg1[%c0_12, %c0_13, %c0_14] : memref<2x8x4xf32, #tpu.memory_space<vmem>>, vector<2x6x4xf32>
    %c0_15 = arith.constant 0 : index
    %c2 = arith.constant 2 : index
    %c8 = arith.constant 8 : index
    %7 = vector.load %arg8[%c0_15, %c2, %c8] : memref<2x8x20xf32, #tpu.memory_space<vmem>>, vector<2x6x4xf32>
    tpu.vector_store %arg8[%c0_15, %c2, %c8], %6 {strides = array<i32>} : memref<2x8x20xf32, #tpu.memory_space<vmem>>, vector<2x6x4xf32>,
    %c0_16 = arith.constant 0 : index
    %c0_17 = arith.constant 0 : index
    %c0_18 = arith.constant 0 : index
    %8 = vector.load %arg1[%c0_16, %c0_17, %c0_18] : memref<2x8x4xf32, #tpu.memory_space<vmem>>, vector<2x7x4xf32>
    %c0_19 = arith.constant 0 : index
    %c1 = arith.constant 1 : index
    %c12 = arith.constant 12 : index
    %9 = vector.load %arg8[%c0_19, %c1, %c12] : memref<2x8x20xf32, #tpu.memory_space<vmem>>, vector<2x7x4xf32>
    tpu.vector_store %arg8[%c0_19, %c1, %c12], %8 {strides = array<i32>} : memref<2x8x20xf32, #tpu.memory_space<vmem>>, vector<2x7x4xf32>,
    %c0_20 = arith.constant 0 : index
    %c0_21 = arith.constant 0 : index
    %c0_22 = arith.constant 0 : index
    %10 = vector.load %arg1[%c0_20, %c0_21, %c0_22] : memref<2x8x4xf32, #tpu.memory_space<vmem>>, vector<2x8x4xf32>
    %c0_23 = arith.constant 0 : index
    %c0_24 = arith.constant 0 : index
    %c16 = arith.constant 16 : index
    %11 = vector.load %arg8[%c0_23, %c0_24, %c16] : memref<2x8x20xf32, #tpu.memory_space<vmem>>, vector<2x8x4xf32>
    tpu.vector_store %arg8[%c0_23, %c0_24, %c16], %10 {strides = array<i32>} : memref<2x8x20xf32, #tpu.memory_space<vmem>>, vector<2x8x4xf32>,
    %c0_25 = arith.constant 0 : index
    %c0_26 = arith.constant 0 : index
    %c0_27 = arith.constant 0 : index
    %12 = vector.load %arg8[%c0_25, %c0_26, %c0_27] : memref<2x8x20xf32, #tpu.memory_space<vmem>>, vector<2x8x20xf32>
    %c0_28 = arith.constant 0 : index
    %c0_29 = arith.constant 0 : index
    %c0_30 = arith.constant 0 : index
    %13 = vector.load %arg2[%c0_28, %c0_29, %c0_30] : memref<2x20x8xf32, #tpu.memory_space<vmem>>, vector<2x20x8xf32>
    "tpu.trace_start"() <{level = 10 : i32, message = "nlj,njo->nlo"}> : () -> ()
    %cst_31 = arith.constant dense<0.000000e+00> : vector<2x8x8xf32>
    %14 = tpu.matmul %12, %13, %cst_31 {dimension_numbers = #tpu.dot_dimension_numbers<[2], [1], [1], [2], [0, 0, 0, 1, 1, 2], [0], [0]>} : vector<2x8x20xf32>, vector<2x20x8xf32>, vector<2x8x8xf32> -> vector<2x8x8xf32>
    "tpu.trace_stop"() : () -> ()
    %cst_32 = arith.constant dense<0.000000e+00> : vector<2x8xf32>
    %15 = vector.multi_reduction <add>, %14, %cst_32 [1] : vector<2x8x8xf32> to vector<2x8xf32>
    %16 = vector.shape_cast %15 : vector<2x8xf32> to vector<2x1x8xf32>
    %cst_33 = arith.constant 8.000000e+00 : f32
    %17 = vector.broadcast %cst_33 : f32 to vector<2x1x8xf32>
    %18 = arith.divf %16, %17 : vector<2x1x8xf32>
    %19 = vector.broadcast %18 : vector<2x1x8xf32> to vector<2x8x8xf32>
    %20 = arith.subf %14, %19 : vector<2x8x8xf32>
    %21 = arith.mulf %20, %20 : vector<2x8x8xf32>
    %cst_34 = arith.constant dense<0.000000e+00> : vector<2x8xf32>
    %22 = vector.multi_reduction <add>, %21, %cst_34 [1] : vector<2x8x8xf32> to vector<2x8xf32>
    %23 = vector.shape_cast %22 : vector<2x8xf32> to vector<2x1x8xf32>
    %cst_35 = arith.constant 8.000000e+00 : f32
    %24 = vector.broadcast %cst_35 : f32 to vector<2x1x8xf32>
    %25 = arith.divf %23, %24 : vector<2x1x8xf32>
    %26 = vector.broadcast %18 : vector<2x1x8xf32> to vector<2x8x8xf32>
    %27 = arith.subf %14, %26 : vector<2x8x8xf32>
    %cst_36 = arith.constant 9.99999974E-6 : f32
    %28 = vector.broadcast %cst_36 : f32 to vector<2x1x8xf32>
    %29 = arith.addf %25, %28 : vector<2x1x8xf32>
    %30 = math.rsqrt %29 : vector<2x1x8xf32>
    %31 = vector.broadcast %30 : vector<2x1x8xf32> to vector<2x8x8xf32>
    %32 = arith.mulf %27, %31 : vector<2x8x8xf32>
    %cst_37 = arith.constant 2.000000e+01 : f32
    %33 = vector.broadcast %cst_37 : f32 to vector<2x8x8xf32>
    %34 = arith.minimumf %32, %33 : vector<2x8x8xf32>
    %35 = math.exp %34 : vector<2x8x8xf32>
    %cst_38 = arith.constant 1.000000e+00 : f32
    %36 = vector.broadcast %cst_38 : f32 to vector<2x8x8xf32>
    %37 = arith.addf %36, %35 : vector<2x8x8xf32>
    %cst_39 = arith.constant 1.000000e+00 : f32
    %38 = vector.broadcast %cst_39 : f32 to vector<2x8x8xf32>
    %39 = arith.addf %38, %35 : vector<2x8x8xf32>
    %40 = arith.mulf %37, %39 : vector<2x8x8xf32>
    %cst_40 = arith.constant 1.000000e+00 : f32
    %41 = vector.broadcast %cst_40 : f32 to vector<2x8x8xf32>
    %42 = arith.subf %40, %41 : vector<2x8x8xf32>
    %cst_41 = arith.constant 1.000000e+00 : f32
    %43 = vector.broadcast %cst_41 : f32 to vector<2x8x8xf32>
    %44 = arith.addf %40, %43 : vector<2x8x8xf32>
    %45 = tpu.reciprocal %44 {approx = true} : vector<2x8x8xf32> -> vector<2x8x8xf32>
    %46 = arith.mulf %42, %45 : vector<2x8x8xf32>
    %cst_42 = arith.constant 2.000000e+01 : f32
    %47 = vector.broadcast %cst_42 : f32 to vector<2x8x8xf32>
    %48 = arith.cmpf ogt, %32, %47 : vector<2x8x8xf32>
    %49 = arith.mulf %32, %46 : vector<2x8x8xf32>
    %50 = arith.select %48, %32, %49 : vector<2x8x8xi1>, vector<2x8x8xf32>
    %cst_43 = arith.constant 0.000000e+00 : f32
    %51 = vector.broadcast %cst_43 : f32 to vector<2x8x40xf32>
    %c0_44 = arith.constant 0 : index
    %c0_45 = arith.constant 0 : index
    %c0_46 = arith.constant 0 : index
    %52 = vector.load %arg9[%c0_44, %c0_45, %c0_46] : memref<2x8x40xf32, #tpu.memory_space<vmem>>, vector<2x8x40xf32>
    tpu.vector_store %arg9[%c0_44, %c0_45, %c0_46], %51 {strides = array<i32>} : memref<2x8x40xf32, #tpu.memory_space<vmem>>, vector<2x8x40xf32>,
    %53 = vector.extract_strided_slice %50 {offsets = [0, 0, 0], sizes = [2, 4, 8], strides = [1, 1, 1]} : vector<2x8x8xf32> to vector<2x4x8xf32>
    %c0_47 = arith.constant 0 : index
    %c4_48 = arith.constant 4 : index
    %c0_49 = arith.constant 0 : index
    %54 = vector.load %arg9[%c0_47, %c4_48, %c0_49] : memref<2x8x40xf32, #tpu.memory_space<vmem>>, vector<2x4x8xf32>
    tpu.vector_store %arg9[%c0_47, %c4_48, %c0_49], %53 {strides = array<i32>} : memref<2x8x40xf32, #tpu.memory_space<vmem>>, vector<2x4x8xf32>,
    %55 = vector.extract_strided_slice %50 {offsets = [0, 0, 0], sizes = [2, 5, 8], strides = [1, 1, 1]} : vector<2x8x8xf32> to vector<2x5x8xf32>
    %c0_50 = arith.constant 0 : index
    %c3_51 = arith.constant 3 : index
    %c8_52 = arith.constant 8 : index
    %56 = vector.load %arg9[%c0_50, %c3_51, %c8_52] : memref<2x8x40xf32, #tpu.memory_space<vmem>>, vector<2x5x8xf32>
    tpu.vector_store %arg9[%c0_50, %c3_51, %c8_52], %55 {strides = array<i32>} : memref<2x8x40xf32, #tpu.memory_space<vmem>>, vector<2x5x8xf32>,
    %57 = vector.extract_strided_slice %50 {offsets = [0, 0, 0], sizes = [2, 6, 8], strides = [1, 1, 1]} : vector<2x8x8xf32> to vector<2x6x8xf32>
    %c0_53 = arith.constant 0 : index
    %c2_54 = arith.constant 2 : index
    %c16_55 = arith.constant 16 : index
    %58 = vector.load %arg9[%c0_53, %c2_54, %c16_55] : memref<2x8x40xf32, #tpu.memory_space<vmem>>, vector<2x6x8xf32>
    tpu.vector_store %arg9[%c0_53, %c2_54, %c16_55], %57 {strides = array<i32>} : memref<2x8x40xf32, #tpu.memory_space<vmem>>, vector<2x6x8xf32>,
    %59 = vector.extract_strided_slice %50 {offsets = [0, 0, 0], sizes = [2, 7, 8], strides = [1, 1, 1]} : vector<2x8x8xf32> to vector<2x7x8xf32>
    %c0_56 = arith.constant 0 : index
    %c1_57 = arith.constant 1 : index
    %c24 = arith.constant 24 : index
    %60 = vector.load %arg9[%c0_56, %c1_57, %c24] : memref<2x8x40xf32, #tpu.memory_space<vmem>>, vector<2x7x8xf32>
    tpu.vector_store %arg9[%c0_56, %c1_57, %c24], %59 {strides = array<i32>} : memref<2x8x40xf32, #tpu.memory_space<vmem>>, vector<2x7x8xf32>,
    %c0_58 = arith.constant 0 : index
    %c0_59 = arith.constant 0 : index
    %c32 = arith.constant 32 : index
    %61 = vector.load %arg9[%c0_58, %c0_59, %c32] : memref<2x8x40xf32, #tpu.memory_space<vmem>>, vector<2x8x8xf32>
    tpu.vector_store %arg9[%c0_58, %c0_59, %c32], %50 {strides = array<i32>} : memref<2x8x40xf32, #tpu.memory_space<vmem>>, vector<2x8x8xf32>,
    %c0_60 = arith.constant 0 : index
    %c0_61 = arith.constant 0 : index
    %c0_62 = arith.constant 0 : index
    %62 = vector.load %arg9[%c0_60, %c0_61, %c0_62] : memref<2x8x40xf32, #tpu.memory_space<vmem>>, vector<2x8x40xf32>
    %c0_63 = arith.constant 0 : index
    %c0_64 = arith.constant 0 : index
    %c0_65 = arith.constant 0 : index
    %63 = vector.load %arg3[%c0_63, %c0_64, %c0_65] : memref<2x40x8xf32, #tpu.memory_space<vmem>>, vector<2x40x8xf32>
    "tpu.trace_start"() <{level = 10 : i32, message = "nlj,njo->nlo"}> : () -> ()
    %cst_66 = arith.constant dense<0.000000e+00> : vector<2x8x8xf32>
    %64 = tpu.matmul %62, %63, %cst_66 {dimension_numbers = #tpu.dot_dimension_numbers<[2], [1], [1], [2], [0, 0, 0, 1, 1, 2], [0], [0]>} : vector<2x8x40xf32>, vector<2x40x8xf32>, vector<2x8x8xf32> -> vector<2x8x8xf32>
    "tpu.trace_stop"() : () -> ()
    %cst_67 = arith.constant dense<0.000000e+00> : vector<2x8xf32>
    %65 = vector.multi_reduction <add>, %64, %cst_67 [1] : vector<2x8x8xf32> to vector<2x8xf32>
    %66 = vector.shape_cast %65 : vector<2x8xf32> to vector<2x1x8xf32>
    %cst_68 = arith.constant 8.000000e+00 : f32
    %67 = vector.broadcast %cst_68 : f32 to vector<2x1x8xf32>
    %68 = arith.divf %66, %67 : vector<2x1x8xf32>
    %69 = vector.broadcast %68 : vector<2x1x8xf32> to vector<2x8x8xf32>
    %70 = arith.subf %64, %69 : vector<2x8x8xf32>
    %71 = arith.mulf %70, %70 : vector<2x8x8xf32>
    %cst_69 = arith.constant dense<0.000000e+00> : vector<2x8xf32>
    %72 = vector.multi_reduction <add>, %71, %cst_69 [1] : vector<2x8x8xf32> to vector<2x8xf32>
    %73 = vector.shape_cast %72 : vector<2x8xf32> to vector<2x1x8xf32>
    %cst_70 = arith.constant 8.000000e+00 : f32
    %74 = vector.broadcast %cst_70 : f32 to vector<2x1x8xf32>
    %75 = arith.divf %73, %74 : vector<2x1x8xf32>
    %76 = vector.broadcast %68 : vector<2x1x8xf32> to vector<2x8x8xf32>
    %77 = arith.subf %64, %76 : vector<2x8x8xf32>
    %cst_71 = arith.constant 9.99999974E-6 : f32
    %78 = vector.broadcast %cst_71 : f32 to vector<2x1x8xf32>
    %79 = arith.addf %75, %78 : vector<2x1x8xf32>
    %80 = math.rsqrt %79 : vector<2x1x8xf32>
    %81 = vector.broadcast %80 : vector<2x1x8xf32> to vector<2x8x8xf32>
    %82 = arith.mulf %77, %81 : vector<2x8x8xf32>
    %cst_72 = arith.constant 2.000000e+01 : f32
    %83 = vector.broadcast %cst_72 : f32 to vector<2x8x8xf32>
    %84 = arith.minimumf %82, %83 : vector<2x8x8xf32>
    %85 = math.exp %84 : vector<2x8x8xf32>
    %cst_73 = arith.constant 1.000000e+00 : f32
    %86 = vector.broadcast %cst_73 : f32 to vector<2x8x8xf32>
    %87 = arith.addf %86, %85 : vector<2x8x8xf32>
    %cst_74 = arith.constant 1.000000e+00 : f32
    %88 = vector.broadcast %cst_74 : f32 to vector<2x8x8xf32>
    %89 = arith.addf %88, %85 : vector<2x8x8xf32>
    %90 = arith.mulf %87, %89 : vector<2x8x8xf32>
    %cst_75 = arith.constant 1.000000e+00 : f32
    %91 = vector.broadcast %cst_75 : f32 to vector<2x8x8xf32>
    %92 = arith.subf %90, %91 : vector<2x8x8xf32>
    %cst_76 = arith.constant 1.000000e+00 : f32
    %93 = vector.broadcast %cst_76 : f32 to vector<2x8x8xf32>
    %94 = arith.addf %90, %93 : vector<2x8x8xf32>
    %95 = tpu.reciprocal %94 {approx = true} : vector<2x8x8xf32> -> vector<2x8x8xf32>
    %96 = arith.mulf %92, %95 : vector<2x8x8xf32>
    %cst_77 = arith.constant 2.000000e+01 : f32
    %97 = vector.broadcast %cst_77 : f32 to vector<2x8x8xf32>
    %98 = arith.cmpf ogt, %82, %97 : vector<2x8x8xf32>
    %99 = arith.mulf %82, %96 : vector<2x8x8xf32>
    %100 = arith.select %98, %82, %99 : vector<2x8x8xi1>, vector<2x8x8xf32>
    %c0_78 = arith.constant 0 : index
    %c0_79 = arith.constant 0 : index
    %c0_80 = arith.constant 0 : index
    %101 = vector.load %arg7[%c0_78, %c0_79, %c0_80] : memref<2x8x8xf32, #tpu.memory_space<vmem>>, vector<2x8x8xf32>
    tpu.vector_store %arg7[%c0_78, %c0_79, %c0_80], %100 {strides = array<i32>} : memref<2x8x8xf32, #tpu.memory_space<vmem>>, vector<2x8x8xf32>,
    %102 = tpu.iota {dimensions = array<i32: 0>} : vector<8x4xi32>
    %103 = tpu.iota {dimensions = array<i32: 1>} : vector<8x4xi32>
    %c2_i32 = arith.constant 2 : i32
    %104 = vector.broadcast %c2_i32 : i32 to vector<8x4xi32>
    %105 = arith.muli %104, %103 : vector<8x4xi32>
    %106 = arith.cmpi eq, %102, %105 : vector<8x4xi32>
    %107 = arith.extui %106 : vector<8x4xi1> to vector<8x4xi32>
    %108 = arith.sitofp %107 : vector<8x4xi32> to vector<8x4xf32>
    %c2_i32_81 = arith.constant 2 : i32
    %109 = vector.broadcast %c2_i32_81 : i32 to vector<8x4xi32>
    %110 = arith.muli %109, %103 : vector<8x4xi32>
    %c1_i32 = arith.constant 1 : i32
    %111 = vector.broadcast %c1_i32 : i32 to vector<8x4xi32>
    %112 = arith.addi %110, %111 : vector<8x4xi32>
    %113 = arith.cmpi eq, %102, %112 : vector<8x4xi32>
    %114 = arith.extui %113 : vector<8x4xi1> to vector<8x4xi32>
    %115 = arith.sitofp %114 : vector<8x4xi32> to vector<8x4xf32>
    %c0_82 = arith.constant 0 : index
    %c0_83 = arith.constant 0 : index
    %116 = vector.load %arg4[%c0_82, %c0_83] : memref<8x8xf32, #tpu.memory_space<vmem>>, vector<8x8xf32>
    %c0_84 = arith.constant 0 : index
    %c0_85 = arith.constant 0 : index
    %117 = vector.load %arg5[%c0_84, %c0_85] : memref<8x8xf32, #tpu.memory_space<vmem>>, vector<8x8xf32>
    %118 = vector.extract_strided_slice %100 {offsets = [0, 0, 0], sizes = [1, 8, 8], strides = [1, 1, 1]} : vector<2x8x8xf32> to vector<1x8x8xf32>
    %119 = vector.shape_cast %118 : vector<1x8x8xf32> to vector<8x8xf32>
    %cst_86 = arith.constant dense<0.000000e+00> : vector<8x4xf32>
    %120 = tpu.matmul %119, %108, %cst_86 {dimension_numbers = #tpu.dot_dimension_numbers<[1], [0], [0], [1], [0, 0, 1, 1], [], []>} : vector<8x8xf32>, vector<8x4xf32>, vector<8x4xf32> -> vector<8x4xf32>
    %cst_87 = arith.constant dense<0.000000e+00> : vector<8x4xf32>
    %121 = tpu.matmul %119, %115, %cst_87 {dimension_numbers = #tpu.dot_dimension_numbers<[1], [0], [0], [1], [0, 0, 1, 1], [], []>} : vector<8x8xf32>, vector<8x4xf32>, vector<8x4xf32> -> vector<8x4xf32>
    %cst_88 = arith.constant dense<0.000000e+00> : vector<8x4xf32>
    %122 = tpu.matmul %116, %120, %cst_88 {dimension_numbers = #tpu.dot_dimension_numbers<[1], [0], [0], [1], [0, 0, 1, 1], [], []>} : vector<8x8xf32>, vector<8x4xf32>, vector<8x4xf32> -> vector<8x4xf32>
    %cst_89 = arith.constant dense<0.000000e+00> : vector<8x4xf32>
    %123 = tpu.matmul %117, %121, %cst_89 {dimension_numbers = #tpu.dot_dimension_numbers<[1], [0], [0], [1], [0, 0, 1, 1], [], []>} : vector<8x8xf32>, vector<8x4xf32>, vector<8x4xf32> -> vector<8x4xf32>
    %124 = arith.addf %122, %123 : vector<8x4xf32>
    %125 = vector.extract_strided_slice %100 {offsets = [1, 0, 0], sizes = [1, 8, 8], strides = [1, 1, 1]} : vector<2x8x8xf32> to vector<1x8x8xf32>
    %126 = vector.shape_cast %125 : vector<1x8x8xf32> to vector<8x8xf32>
    %cst_90 = arith.constant dense<0.000000e+00> : vector<8x4xf32>
    %127 = tpu.matmul %126, %108, %cst_90 {dimension_numbers = #tpu.dot_dimension_numbers<[1], [0], [0], [1], [0, 0, 1, 1], [], []>} : vector<8x8xf32>, vector<8x4xf32>, vector<8x4xf32> -> vector<8x4xf32>
    %cst_91 = arith.constant dense<0.000000e+00> : vector<8x4xf32>
    %128 = tpu.matmul %126, %115, %cst_91 {dimension_numbers = #tpu.dot_dimension_numbers<[1], [0], [0], [1], [0, 0, 1, 1], [], []>} : vector<8x8xf32>, vector<8x4xf32>, vector<8x4xf32> -> vector<8x4xf32>
    %cst_92 = arith.constant dense<0.000000e+00> : vector<8x4xf32>
    %129 = tpu.matmul %116, %127, %cst_92 {dimension_numbers = #tpu.dot_dimension_numbers<[1], [0], [0], [1], [0, 0, 1, 1], [], []>} : vector<8x8xf32>, vector<8x4xf32>, vector<8x4xf32> -> vector<8x4xf32>
    %cst_93 = arith.constant dense<0.000000e+00> : vector<8x4xf32>
    %130 = tpu.matmul %117, %128, %cst_93 {dimension_numbers = #tpu.dot_dimension_numbers<[1], [0], [0], [1], [0, 0, 1, 1], [], []>} : vector<8x8xf32>, vector<8x4xf32>, vector<8x4xf32> -> vector<8x4xf32>
    %131 = arith.addf %129, %130 : vector<8x4xf32>
    %132 = vector.shape_cast %124 : vector<8x4xf32> to vector<1x8x4xf32>
    %133 = vector.shape_cast %131 : vector<8x4xf32> to vector<1x8x4xf32>
    %134 = tpu.concatenate %132, %133 in 0 : vector<1x8x4xf32>, vector<1x8x4xf32> -> vector<2x8x4xf32>
    %cst_94 = arith.constant dense<0.000000e+00> : vector<8xf32>
    %135 = vector.multi_reduction <add>, %134, %cst_94 [0, 2] : vector<2x8x4xf32> to vector<8xf32>
    %136 = vector.shape_cast %135 : vector<8xf32> to vector<1x8x1xf32>
    %cst_95 = arith.constant 8.000000e+00 : f32
    %137 = vector.broadcast %cst_95 : f32 to vector<1x8x1xf32>
    %138 = arith.divf %136, %137 : vector<1x8x1xf32>
    %139 = vector.broadcast %138 : vector<1x8x1xf32> to vector<2x8x4xf32>
    %140 = arith.subf %134, %139 : vector<2x8x4xf32>
    %141 = arith.mulf %140, %140 : vector<2x8x4xf32>
    %cst_96 = arith.constant dense<0.000000e+00> : vector<8xf32>
    %142 = vector.multi_reduction <add>, %141, %cst_96 [0, 2] : vector<2x8x4xf32> to vector<8xf32>
    %143 = vector.shape_cast %142 : vector<8xf32> to vector<1x8x1xf32>
    %cst_97 = arith.constant 8.000000e+00 : f32
    %144 = vector.broadcast %cst_97 : f32 to vector<1x8x1xf32>
    %145 = arith.divf %143, %144 : vector<1x8x1xf32>
    %146 = vector.broadcast %138 : vector<1x8x1xf32> to vector<2x8x4xf32>
    %147 = arith.subf %134, %146 : vector<2x8x4xf32>
    %cst_98 = arith.constant 9.99999974E-6 : f32
    %148 = vector.broadcast %cst_98 : f32 to vector<1x8x1xf32>
    %149 = arith.addf %145, %148 : vector<1x8x1xf32>
    %150 = math.rsqrt %149 : vector<1x8x1xf32>
    %151 = vector.broadcast %150 : vector<1x8x1xf32> to vector<2x8x4xf32>
    %152 = arith.mulf %147, %151 : vector<2x8x4xf32>
    %cst_99 = arith.constant 2.000000e+01 : f32
    %153 = vector.broadcast %cst_99 : f32 to vector<2x8x4xf32>
    %154 = arith.minimumf %152, %153 : vector<2x8x4xf32>
    %155 = math.exp %154 : vector<2x8x4xf32>
    %cst_100 = arith.constant 1.000000e+00 : f32
    %156 = vector.broadcast %cst_100 : f32 to vector<2x8x4xf32>
    %157 = arith.addf %156, %155 : vector<2x8x4xf32>
    %cst_101 = arith.constant 1.000000e+00 : f32
    %158 = vector.broadcast %cst_101 : f32 to vector<2x8x4xf32>
    %159 = arith.addf %158, %155 : vector<2x8x4xf32>
    %160 = arith.mulf %157, %159 : vector<2x8x4xf32>
    %cst_102 = arith.constant 1.000000e+00 : f32
    %161 = vector.broadcast %cst_102 : f32 to vector<2x8x4xf32>
    %162 = arith.subf %160, %161 : vector<2x8x4xf32>
    %cst_103 = arith.constant 1.000000e+00 : f32
    %163 = vector.broadcast %cst_103 : f32 to vector<2x8x4xf32>
    %164 = arith.addf %160, %163 : vector<2x8x4xf32>
    %165 = tpu.reciprocal %164 {approx = true} : vector<2x8x4xf32> -> vector<2x8x4xf32>
    %166 = arith.mulf %162, %165 : vector<2x8x4xf32>
    %cst_104 = arith.constant 2.000000e+01 : f32
    %167 = vector.broadcast %cst_104 : f32 to vector<2x8x4xf32>
    %168 = arith.cmpf ogt, %152, %167 : vector<2x8x4xf32>
    %169 = arith.mulf %152, %166 : vector<2x8x4xf32>
    %170 = arith.select %168, %152, %169 : vector<2x8x4xi1>, vector<2x8x4xf32>
    %c0_105 = arith.constant 0 : index
    %c0_106 = arith.constant 0 : index
    %c0_107 = arith.constant 0 : index
    %171 = vector.load %arg6[%c0_105, %c0_106, %c0_107] : memref<2x8x4xf32, #tpu.memory_space<vmem>>, vector<2x8x4xf32>
    tpu.vector_store %arg6[%c0_105, %c0_106, %c0_107], %170 {strides = array<i32>} : memref<2x8x4xf32, #tpu.memory_space<vmem>>, vector<2x8x4xf32>,
    return
  }
  func.func @transform_0(%arg0: i32) -> (i32, i32, i32) {
    %c0_i32 = arith.constant 0 : i32
    %c0_i32_0 = arith.constant 0 : i32
    %c0_i32_1 = arith.constant 0 : i32
    %c0_i32_2 = arith.constant 0 : i32
    return %c0_i32, %c0_i32_0, %c0_i32_1 : i32, i32, i32
  }
  func.func @transform_1(%arg0: i32) -> (i32, i32, i32) {
    %c0_i32 = arith.constant 0 : i32
    %c0_i32_0 = arith.constant 0 : i32
    %c0_i32_1 = arith.constant 0 : i32
    %c0_i32_2 = arith.constant 0 : i32
    return %c0_i32, %c0_i32_0, %c0_i32_1 : i32, i32, i32
  }
  func.func @transform_2(%arg0: i32) -> (i32, i32, i32) {
    %c0_i32 = arith.constant 0 : i32
    %c0_i32_0 = arith.constant 0 : i32
    %c0_i32_1 = arith.constant 0 : i32
    %c0_i32_2 = arith.constant 0 : i32
    return %c0_i32, %c0_i32_0, %c0_i32_1 : i32, i32, i32
  }
  func.func @transform_3(%arg0: i32) -> (i32, i32) {
    %c0_i32 = arith.constant 0 : i32
    %c0_i32_0 = arith.constant 0 : i32
    %c0_i32_1 = arith.constant 0 : i32
    return %c0_i32, %c0_i32_0 : i32, i32
  }
  func.func @transform_4(%arg0: i32) -> (i32, i32) {
    %c0_i32 = arith.constant 0 : i32
    %c0_i32_0 = arith.constant 0 : i32
    %c0_i32_1 = arith.constant 0 : i32
    return %c0_i32, %c0_i32_0 : i32, i32
  }
  func.func @transform_5(%arg0: i32) -> (i32, i32, i32) {
    %c0_i32 = arith.constant 0 : i32
    %c0_i32_0 = arith.constant 0 : i32
    %c0_i32_1 = arith.constant 0 : i32
    %c0_i32_2 = arith.constant 0 : i32
    return %c0_i32, %c0_i32_0, %c0_i32_1 : i32, i32, i32
  }
  func.func @transform_6(%arg0: i32) -> (i32, i32, i32) {
    %c0_i32 = arith.constant 0 : i32
    %c0_i32_0 = arith.constant 0 : i32
    %c0_i32_1 = arith.constant 0 : i32
    %c0_i32_2 = arith.constant 0 : i32
    return %c0_i32, %c0_i32_0, %c0_i32_1 : i32, i32, i32
  }
}

</mosaic_0001>

<llo_original>
// kernel: mode_encoder_block_forward.1
$region0: #{mode_encoder_block_forward.1}
  #allocation0 [shape = 'u32[]', space=smem, size = 0x4, offset = 0x4, fixed_abs, tag = 'smem constant byte address 0x4 - core index']
  #allocation1 [shape = 'u32[144,128]{1,0:T(1,128)}', space=vmem, size = 0x12000, scoped, tag = 'internal scratch']
  #allocation2 [shape = 'f32[2,8,20]{2,1,0:T(8,128)}', space=vmem, size = 0x2000, scoped, tag = 'scratch operand']
  #allocation3 [shape = 'f32[2,8,40]{2,1,0:T(8,128)}', space=vmem, size = 0x2000, scoped, tag = 'scratch operand']
  %s0 = inlined_call_operand.vmem [shape: f32[2,8,4], index: 0, kind: input, shape index: {}]
  %s1 = inlined_call_operand.vmem [shape: f32[2,20,8], index: 1, kind: input, shape index: {}]
  %s2 = inlined_call_operand.vmem [shape: f32[2,40,8], index: 2, kind: input, shape index: {}]
  %s3 = inlined_call_operand.vmem [shape: f32[8,8], index: 3, kind: input, shape index: {}]
  %s4 = inlined_call_operand.vmem [shape: f32[8,8], index: 4, kind: input, shape index: {}]
  %s5 = inlined_call_operand.vmem [shape: f32[2,8,4], index: 5, kind: output, shape index: {0}]
  %s6 = inlined_call_operand.hbm [shape: f32[2,8,8], index: 6, kind: output, shape index: {1}]
  %7 = xla_tuple %s5, %s6
  %s8 = sld [smem:[#allocation0]]
  $region38: #{mode_encoder_block_forward.1} parent=0
    _
  %s10 = ssub.s32 1, %s8
  %s11 = scalar_select 0, %s10, %s8
  $region1: #{mode_encoder_block_forward.1} parent=0
    #allocation4 [shape = 'u8[8192]{0}', space=vmem, size = 0x2000, scoped, tag = 'output window, operand 1, single buffered']
    #allocation5 [shape = 's32[1]{0}', space=sflag, size = 0x4, scoped, tag = 'scoped memory for mode_encoder_block_forward.1']
    %12 = vsyncpa [#allocation5], 0
    // Predicated region
    $region2: #{mode_encoder_block_forward.1} parent=1 // pred_check
      _
    $region3: #{mode_encoder_block_forward.1} parent=1 // pred_check_branch
      %14 = sbr.rel (0) target = $region5
    $region4: #{mode_encoder_block_forward.1} parent=1 // pred_region
      _
    $region5: #{mode_encoder_block_forward.1} parent=1 // pred_fallthru
      _
    // Predicated region
    $region6: #{mode_encoder_block_forward.1} parent=1 // pred_check
      _
    $region7: #{mode_encoder_block_forward.1} parent=1 // pred_check_branch
      %16 = sbr.rel (0) target = $region9
    $region8: #{mode_encoder_block_forward.1} parent=1 // pred_region
      _
    $region9: #{mode_encoder_block_forward.1} parent=1 // pred_fallthru
      _
    // Predicated region
    $region10: #{mode_encoder_block_forward.1} parent=1 // pred_check
      _
    $region11: #{mode_encoder_block_forward.1} parent=1 // pred_check_branch
      %18 = sbr.rel (0) target = $region13
    $region12: #{mode_encoder_block_forward.1} parent=1 // pred_region
      _
    $region13: #{mode_encoder_block_forward.1} parent=1 // pred_fallthru
      _
    // Predicated region
    $region14: #{mode_encoder_block_forward.1} parent=1 // pred_check
      _
    $region15: #{mode_encoder_block_forward.1} parent=1 // pred_check_branch
      %20 = sbr.rel (0) target = $region17
    $region16: #{mode_encoder_block_forward.1} parent=1 // pred_region
      _
    $region17: #{mode_encoder_block_forward.1} parent=1 // pred_fallthru
      _
    // Predicated region
    $region18: #{mode_encoder_block_forward.1} parent=1 // pred_check
      _
    $region19: #{mode_encoder_block_forward.1} parent=1 // pred_check_branch
      %22 = sbr.rel (0) target = $region21
    $region20: #{mode_encoder_block_forward.1} parent=1 // pred_region
      _
    $region21: #{mode_encoder_block_forward.1} parent=1 // pred_fallthru
      _
    %vm23 = vcmask 162816
    %24 = vst.msk [vmem:[#allocation2] sm:$0xff] %vm23, 0.0
    %25 = vst.msk [vmem:[#allocation2 + $0x8] sm:$0xff] %vm23, 0.0
    %v26 = vld [vmem:[%s0] sm:$0xf]
    %v27 = vld [vmem:[%s0 + $0x8] sm:$0xf]
    %vm28 = vcmask 27648
    %29 = vst.msk [vmem:[#allocation2 + $0x4] sm:$0xf] %vm28, %v26
    %30 = vst.msk [vmem:[#allocation2 + $0xc] sm:$0xf] %vm28, %v27
    %v31 = vld [vmem:[%s0] sm:$0x1f]
    %v32 = vld [vmem:[%s0 + $0x8] sm:$0x1f]
    %35 = vrot.lane.b32.xlu0 %v31, 4
    %v36 = vpop.permute.xlu0 %35
    %37 = vrot.lane.b32.xlu0 %v32, 4
    %v38 = vpop.permute.xlu0 %37
    %vm41 = vcmask 61472
    %42 = vst.msk [vmem:[#allocation2 + $0x3] sm:$0x1f] %vm41, %v36
    %43 = vst.msk [vmem:[#allocation2 + $0xb] sm:$0x1f] %vm41, %v38
    %v44 = vld [vmem:[%s0] sm:$0x3f]
    %v45 = vld [vmem:[%s0 + $0x8] sm:$0x3f]
    %48 = vrot.lane.b32.xlu0 %v44, 8
    %v49 = vpop.permute.xlu0 %48
    %50 = vrot.lane.b32.xlu0 %v45, 8
    %v51 = vpop.permute.xlu0 %50
    %vm54 = vcmask 95296
    %55 = vst.msk [vmem:[#allocation2 + $0x2] sm:$0x3f] %vm54, %v49
    %56 = vst.msk [vmem:[#allocation2 + $0xa] sm:$0x3f] %vm54, %v51
    %v57 = vld [vmem:[%s0] sm:$0x7f]
    %v58 = vld [vmem:[%s0 + $0x8] sm:$0x7f]
    %61 = vrot.lane.b32.xlu0 %v57, 12
    %v62 = vpop.permute.xlu0 %61
    %63 = vrot.lane.b32.xlu0 %v58, 12
    %v64 = vpop.permute.xlu0 %63
    %vm67 = vcmask 129120
    %68 = vst.msk [vmem:[#allocation2 + $0x1] sm:$0x7f] %vm67, %v62
    %69 = vst.msk [vmem:[#allocation2 + $0x9] sm:$0x7f] %vm67, %v64
    %v70 = vld [vmem:[%s0] sm:$0xff]
    %v71 = vld [vmem:[%s0 + $0x8] sm:$0xff]
    %74 = vrot.lane.b32.xlu0 %v70, 16
    %v75 = vpop.permute.xlu0 %74
    %76 = vrot.lane.b32.xlu0 %v71, 16
    %v77 = vpop.permute.xlu0 %76
    %vm80 = vcmask 162944
    %81 = vst.msk [vmem:[#allocation2] sm:$0xff] %vm80, %v75
    %82 = vst.msk [vmem:[#allocation2 + $0x8] sm:$0xff] %vm80, %v77
    %v83 = vld [vmem:[#allocation2] sm:$0xff]
    %v84 = vld [vmem:[#allocation2 + $0x8] sm:$0xff]
    %v85 = vld [vmem:[%s1] sm:$0xff]
    %v86 = vld [vmem:[%s1 + $0x8] sm:$0xff]
    %v87 = vld [vmem:[%s1 + $0x10] sm:$0xf]
    %v88 = vld [vmem:[%s1 + $0x18] sm:$0xff]
    %v89 = vld [vmem:[%s1 + $0x20] sm:$0xff]
    %v90 = vld [vmem:[%s1 + $0x28] sm:$0xf]
    %v92 = vsel %vm23, %v83, 0
    %vm94 = vcmask 1043456
    %v96 = vsel %vm94, %v87, 0
    %98 = vmatprep.subr.mxu0 0.0
    %99 = vmatpush1.msra.mxu0 %v85
    %100 = vmatprep.subr.mxu0 0.0
    %101 = vmatpush1.msra.mxu0 %v86
    %102 = vmatprep.subr.mxu0 0.0
    %103 = vmatpush1.msra.mxu0 %v96
    %104 = vmatprep.subr.mxu0 0.0
    %105 = vmatpush1.msra.mxu0 0.0
    %106 = vmatprep.subr.mxu0 0.0
    %107 = vmatpush1.msra.mxu0 0.0
    %108 = vmatprep.subr.mxu0 0.0
    %109 = vmatpush1.msra.mxu0 0.0
    %110 = vmatprep.subr.mxu0 0.0
    %111 = vmatpush1.msra.mxu0 0.0
    %112 = vmatprep.subr.mxu0 0.0
    %113 = vmatpush1.msra.mxu0 0.0
    %114 = vmatprep.subr.mxu0 0.0
    %115 = vmatpush1.msra.mxu0 0.0
    %116 = vmatprep.subr.mxu0 0.0
    %117 = vmatpush1.msra.mxu0 0.0
    %118 = vmatprep.subr.mxu0 0.0
    %119 = vmatpush1.msra.mxu0 0.0
    %120 = vmatprep.subr.mxu0 0.0
    %121 = vmatpush1.msra.mxu0 0.0
    %122 = vmatprep.subr.mxu0 0.0
    %123 = vmatpush1.msra.mxu0 0.0
    %124 = vmatprep.subr.mxu0 0.0
    %125 = vmatpush1.msra.mxu0 0.0
    %126 = vmatprep.subr.mxu0 0.0
    %127 = vmatpush1.msra.mxu0 0.0
    %128 = vmatprep.subr.mxu0 0.0
    %129 = vmatpush1.msra.mxu0 0.0
    %130 = vmatprep.subr.mxu0 0.0
    %131 = vmatpush1.msra.mxu0 0.0
    %132 = vmatprep.subr.mxu0 0.0
    %133 = vmatpush1.msra.mxu0 0.0
    %134 = vmatprep.subr.mxu0 0.0
    %135 = vmatpush1.msra.mxu0 0.0
    %136 = vmatprep.subr.mxu0 0.0
    %137 = vmatpush1.msra.mxu0 0.0
    %138 = vmatprep.subr.mxu0 0.0
    %139 = vmatpush1.msra.mxu0 0.0
    %140 = vmatprep.subr.mxu0 0.0
    %141 = vmatpush1.msra.mxu0 0.0
    %142 = vmatprep.subr.mxu0 0.0
    %143 = vmatpush1.msra.mxu0 0.0
    %144 = vmatprep.subr.mxu0 0.0
    %145 = vmatpush1.msra.mxu0 0.0
    %146 = vmatprep.subr.mxu0 0.0
    %147 = vmatpush1.msra.mxu0 0.0
    %148 = vmatprep.subr.mxu0 0.0
    %149 = vmatpush1.msra.mxu0 0.0
    %150 = vmatprep.subr.mxu0 0.0
    %151 = vmatpush1.msra.mxu0 0.0
    %152 = vmatprep.subr.mxu0 0.0
    %153 = vmatpush1.msra.mxu0 0.0
    %154 = vmatprep.subr.mxu0 0.0
    %155 = vmatpush1.msra.mxu0 0.0
    %156 = vmatprep.subr.mxu0 0.0
    %157 = vmatpush1.msra.mxu0 0.0
    %158 = vmatprep.subr.mxu0 0.0
    %159 = vmatpush1.msra.mxu0 0.0
    %160 = vmatprep.subr.mxu0 0.0
    %161 = vmatpush1.msra.mxu0 0.0
    %162 = vmatprep.mubr.f32.mxu0 0.0
    %163 = vmatmul.mubr.f32.gmra.mrb[0].mxu0 %v92
    %v164 = vpop.f32.mrb[0].mxu0
    %v165 = vadd.f32 0.0, %v164
    %v166 = vpop.f32.mrb[0].mxu0
    %167 = vdwg.mxu0
    %v169 = vsel %vm23, %v84, 0
    %v172 = vsel %vm94, %v90, 0
    %174 = vmatprep.subr.mxu0 0.0
    %175 = vmatpush1.msra.mxu0 %v88
    %176 = vmatprep.subr.mxu0 0.0
    %177 = vmatpush1.msra.mxu0 %v89
    %178 = vmatprep.subr.mxu0 0.0
    %179 = vmatpush1.msra.mxu0 %v172
    %180 = vmatprep.subr.mxu0 0.0
    %181 = vmatpush1.msra.mxu0 0.0
    %182 = vmatprep.subr.mxu0 0.0
    %183 = vmatpush1.msra.mxu0 0.0
    %184 = vmatprep.subr.mxu0 0.0
    %185 = vmatpush1.msra.mxu0 0.0
    %186 = vmatprep.subr.mxu0 0.0
    %187 = vmatpush1.msra.mxu0 0.0
    %188 = vmatprep.subr.mxu0 0.0
    %189 = vmatpush1.msra.mxu0 0.0
    %190 = vmatprep.subr.mxu0 0.0
    %191 = vmatpush1.msra.mxu0 0.0
    %192 = vmatprep.subr.mxu0 0.0
    %193 = vmatpush1.msra.mxu0 0.0
    %194 = vmatprep.subr.mxu0 0.0
    %195 = vmatpush1.msra.mxu0 0.0
    %196 = vmatprep.subr.mxu0 0.0
    %197 = vmatpush1.msra.mxu0 0.0
    %198 = vmatprep.subr.mxu0 0.0
    %199 = vmatpush1.msra.mxu0 0.0
    %200 = vmatprep.subr.mxu0 0.0
    %201 = vmatpush1.msra.mxu0 0.0
    %202 = vmatprep.subr.mxu0 0.0
    %203 = vmatpush1.msra.mxu0 0.0
    %204 = vmatprep.subr.mxu0 0.0
    %205 = vmatpush1.msra.mxu0 0.0
    %206 = vmatprep.subr.mxu0 0.0
    %207 = vmatpush1.msra.mxu0 0.0
    %208 = vmatprep.subr.mxu0 0.0
    %209 = vmatpush1.msra.mxu0 0.0
    %210 = vmatprep.subr.mxu0 0.0
    %211 = vmatpush1.msra.mxu0 0.0
    %212 = vmatprep.subr.mxu0 0.0
    %213 = vmatpush1.msra.mxu0 0.0
    %214 = vmatprep.subr.mxu0 0.0
    %215 = vmatpush1.msra.mxu0 0.0
    %216 = vmatprep.subr.mxu0 0.0
    %217 = vmatpush1.msra.mxu0 0.0
    %218 = vmatprep.subr.mxu0 0.0
    %219 = vmatpush1.msra.mxu0 0.0
    %220 = vmatprep.subr.mxu0 0.0
    %221 = vmatpush1.msra.mxu0 0.0
    %222 = vmatprep.subr.mxu0 0.0
    %223 = vmatpush1.msra.mxu0 0.0
    %224 = vmatprep.subr.mxu0 0.0
    %225 = vmatpush1.msra.mxu0 0.0
    %226 = vmatprep.subr.mxu0 0.0
    %227 = vmatpush1.msra.mxu0 0.0
    %228 = vmatprep.subr.mxu0 0.0
    %229 = vmatpush1.msra.mxu0 0.0
    %230 = vmatprep.subr.mxu0 0.0
    %231 = vmatpush1.msra.mxu0 0.0
    %232 = vmatprep.subr.mxu0 0.0
    %233 = vmatpush1.msra.mxu0 0.0
    %234 = vmatprep.subr.mxu0 0.0
    %235 = vmatpush1.msra.mxu0 0.0
    %236 = vmatprep.subr.mxu0 0.0
    %237 = vmatpush1.msra.mxu0 0.0
    %238 = vmatprep.mubr.f32.mxu0 0.0
    %239 = vmatmul.mubr.f32.gmra.mrb[0].mxu0 %v169
    %v240 = vpop.f32.mrb[0].mxu0
    %v241 = vadd.f32 0.0, %v240
    %v242 = vpop.f32.mrb[0].mxu0
    %243 = vdwg.mxu0
    %vm244 = vcmask 64512
    %v245 = vsel %vm244, %v165, 0.0
    %v246 = vrot.slane %v245, 4
    %v247 = vadd.f32 %v245, %v246
    %v248 = vrot.slane %v247, 2
    %v249 = vadd.f32 %v247, %v248
    %v250 = vrot.slane %v249, 1
    %v251 = vadd.f32 %v249, %v250
    %v252 = vsel %vm244, %v241, 0.0
    %v253 = vrot.slane %v252, 4
    %v254 = vadd.f32 %v252, %v253
    %v255 = vrot.slane %v254, 2
    %v256 = vadd.f32 %v254, %v255
    %v257 = vrot.slane %v256, 1
    %v258 = vadd.f32 %v256, %v257
    %v259 = vrcp.pop 8.0
    %v260 = vmul.f32 %v251, %v259
    %v261 = vmul.f32 %v258, %v259
    %v262 = vsub.f32 %v165, %v260
    %v263 = vsub.f32 %v241, %v261
    %v264 = vmul.f32 %v262, %v262
    %v265 = vmul.f32 %v263, %v263
    %v266 = vsel %vm244, %v264, 0.0
    %v267 = vrot.slane %v266, 4
    %v268 = vadd.f32 %v266, %v267
    %v269 = vrot.slane %v268, 2
    %v270 = vadd.f32 %v268, %v269
    %v271 = vrot.slane %v270, 1
    %v272 = vadd.f32 %v270, %v271
    %v273 = vsel %vm244, %v265, 0.0
    %v274 = vrot.slane %v273, 4
    %v275 = vadd.f32 %v273, %v274
    %v276 = vrot.slane %v275, 2
    %v277 = vadd.f32 %v275, %v276
    %v278 = vrot.slane %v277, 1
    %v279 = vadd.f32 %v277, %v278
    %v280 = vmul.f32 %v272, %v259
    %v281 = vmul.f32 %v279, %v259
    %v282 = vadd.f32 %v280, 1e-05
    %v283 = vadd.f32 %v281, 1e-05
    %v284 = vrsqrt.pop %v282
    %v285 = vrsqrt.pop %v283
    %v286 = vmul.f32 %v262, %v284
    %v287 = vmul.f32 %v263, %v285
    %v288 = vmin.f32 %v286, 20.0
    %v289 = vmin.f32 %v287, 20.0
    %v290 = vmul.f32 %v288, 1.442695
    %v291 = vpow.pop %v290
    %v292 = vmul.f32 %v289, 1.442695
    %v293 = vpow.pop %v292
    %v294 = vadd.f32 %v291, 1.0
    %v295 = vadd.f32 %v293, 1.0
    %v296 = vmul.f32 %v294, %v294
    %v297 = vmul.f32 %v295, %v295
    %v298 = vsub.f32 %v296, 1.0
    %v299 = vsub.f32 %v297, 1.0
    %v300 = vadd.f32 %v296, 1.0
    %v301 = vadd.f32 %v297, 1.0
    %v302 = vrcp.pop %v300
    %v303 = vrcp.pop %v301
    %v304 = vmul.f32 %v298, %v302
    %v305 = vmul.f32 %v299, %v303
    %vm306 = vcmp.gt.f32.partialorder %v286, 20.0
    %vm307 = vcmp.gt.f32.partialorder %v287, 20.0
    %v308 = vmul.f32 %v286, %v304
    %v309 = vmul.f32 %v287, %v305
    %v310 = vsel %vm306, %v286, %v308
    %v311 = vsel %vm307, %v287, %v309
    %vm312 = vcmask 326656
    %313 = vst.msk [vmem:[#allocation3] sm:$0xff] %vm312, 0.0
    %314 = vst.msk [vmem:[#allocation3 + $0x8] sm:$0xff] %vm312, 0.0
    %vm315 = vcmask 60416
    %316 = vst.msk [vmem:[#allocation3 + $0x4] sm:$0xf] %vm315, %v310
    %317 = vst.msk [vmem:[#allocation3 + $0xc] sm:$0xf] %vm315, %v311
    %320 = vrot.lane.b32.xlu0 %v310, 8
    %v321 = vpop.permute.xlu0 %320
    %322 = vrot.lane.b32.xlu0 %v311, 8
    %v323 = vpop.permute.xlu0 %322
    %vm326 = vcmask 127040
    %327 = vst.msk [vmem:[#allocation3 + $0x3] sm:$0x1f] %vm326, %v321
    %328 = vst.msk [vmem:[#allocation3 + $0xb] sm:$0x1f] %vm326, %v323
    %329 = vrot.lane.b32.xlu0 %v310, 16
    %v330 = vpop.permute.xlu0 %329
    %331 = vrot.lane.b32.xlu0 %v311, 16
    %v332 = vpop.permute.xlu0 %331
    %vm335 = vcmask 193664
    %336 = vst.msk [vmem:[#allocation3 + $0x2] sm:$0x3f] %vm335, %v330
    %337 = vst.msk [vmem:[#allocation3 + $0xa] sm:$0x3f] %vm335, %v332
    %338 = vrot.lane.b32.xlu0 %v310, 24
    %v339 = vpop.permute.xlu0 %338
    %340 = vrot.lane.b32.xlu0 %v311, 24
    %v341 = vpop.permute.xlu0 %340
    %vm344 = vcmask 260288
    %345 = vst.msk [vmem:[#allocation3 + $0x1] sm:$0x7f] %vm344, %v339
    %346 = vst.msk [vmem:[#allocation3 + $0x9] sm:$0x7f] %vm344, %v341
    %347 = vrot.lane.b32.xlu0 %v310, 32
    %v348 = vpop.permute.xlu0 %347
    %349 = vrot.lane.b32.xlu0 %v311, 32
    %v350 = vpop.permute.xlu0 %349
    %vm353 = vcmask 326912
    %354 = vst.msk [vmem:[#allocation3] sm:$0xff] %vm353, %v348
    %355 = vst.msk [vmem:[#allocation3 + $0x8] sm:$0xff] %vm353, %v350
    %v356 = vld [vmem:[#allocation3] sm:$0xff]
    %v357 = vld [vmem:[#allocation3 + $0x8] sm:$0xff]
    %v358 = vld [vmem:[%s2] sm:$0xff]
    %v359 = vld [vmem:[%s2 + $0x8] sm:$0xff]
    %v360 = vld [vmem:[%s2 + $0x10] sm:$0xff]
    %v361 = vld [vmem:[%s2 + $0x18] sm:$0xff]
    %v362 = vld [vmem:[%s2 + $0x20] sm:$0xff]
    %v363 = vld [vmem:[%s2 + $0x28] sm:$0xff]
    %v364 = vld [vmem:[%s2 + $0x30] sm:$0xff]
    %v365 = vld [vmem:[%s2 + $0x38] sm:$0xff]
    %v366 = vld [vmem:[%s2 + $0x40] sm:$0xff]
    %v367 = vld [vmem:[%s2 + $0x48] sm:$0xff]
    %v369 = vsel %vm312, %v356, 0
    %371 = vmatprep.subr.mxu0 0.0
    %372 = vmatpush1.msra.mxu0 %v358
    %373 = vmatprep.subr.mxu0 0.0
    %374 = vmatpush1.msra.mxu0 %v359
    %375 = vmatprep.subr.mxu0 0.0
    %376 = vmatpush1.msra.mxu0 %v360
    %377 = vmatprep.subr.mxu0 0.0
    %378 = vmatpush1.msra.mxu0 %v361
    %379 = vmatprep.subr.mxu0 0.0
    %380 = vmatpush1.msra.mxu0 %v362
    %381 = vmatprep.subr.mxu0 0.0
    %382 = vmatpush1.msra.mxu0 0.0
    %383 = vmatprep.subr.mxu0 0.0
    %384 = vmatpush1.msra.mxu0 0.0
    %385 = vmatprep.subr.mxu0 0.0
    %386 = vmatpush1.msra.mxu0 0.0
    %387 = vmatprep.subr.mxu0 0.0
    %388 = vmatpush1.msra.mxu0 0.0
    %389 = vmatprep.subr.mxu0 0.0
    %390 = vmatpush1.msra.mxu0 0.0
    %391 = vmatprep.subr.mxu0 0.0
    %392 = vmatpush1.msra.mxu0 0.0
    %393 = vmatprep.subr.mxu0 0.0
    %394 = vmatpush1.msra.mxu0 0.0
    %395 = vmatprep.subr.mxu0 0.0
    %396 = vmatpush1.msra.mxu0 0.0
    %397 = vmatprep.subr.mxu0 0.0
    %398 = vmatpush1.msra.mxu0 0.0
    %399 = vmatprep.subr.mxu0 0.0
    %400 = vmatpush1.msra.mxu0 0.0
    %401 = vmatprep.subr.mxu0 0.0
    %402 = vmatpush1.msra.mxu0 0.0
    %403 = vmatprep.subr.mxu0 0.0
    %404 = vmatpush1.msra.mxu0 0.0
    %405 = vmatprep.subr.mxu0 0.0
    %406 = vmatpush1.msra.mxu0 0.0
    %407 = vmatprep.subr.mxu0 0.0
    %408 = vmatpush1.msra.mxu0 0.0
    %409 = vmatprep.subr.mxu0 0.0
    %410 = vmatpush1.msra.mxu0 0.0
    %411 = vmatprep.subr.mxu0 0.0
    %412 = vmatpush1.msra.mxu0 0.0
    %413 = vmatprep.subr.mxu0 0.0
    %414 = vmatpush1.msra.mxu0 0.0
    %415 = vmatprep.subr.mxu0 0.0
    %416 = vmatpush1.msra.mxu0 0.0
    %417 = vmatprep.subr.mxu0 0.0
    %418 = vmatpush1.msra.mxu0 0.0
    %419 = vmatprep.subr.mxu0 0.0
    %420 = vmatpush1.msra.mxu0 0.0
    %421 = vmatprep.subr.mxu0 0.0
    %422 = vmatpush1.msra.mxu0 0.0
    %423 = vmatprep.subr.mxu0 0.0
    %424 = vmatpush1.msra.mxu0 0.0
    %425 = vmatprep.subr.mxu0 0.0
    %426 = vmatpush1.msra.mxu0 0.0
    %427 = vmatprep.subr.mxu0 0.0
    %428 = vmatpush1.msra.mxu0 0.0
    %429 = vmatprep.subr.mxu0 0.0
    %430 = vmatpush1.msra.mxu0 0.0
    %431 = vmatprep.subr.mxu0 0.0
    %432 = vmatpush1.msra.mxu0 0.0
    %433 = vmatprep.subr.mxu0 0.0
    %434 = vmatpush1.msra.mxu0 0.0
    %435 = vmatprep.mubr.f32.mxu0 0.0
    %436 = vmatmul.mubr.f32.gmra.mrb[0].mxu0 %v369
    %v437 = vpop.f32.mrb[0].mxu0
    %v438 = vadd.f32 0.0, %v437
    %v439 = vpop.f32.mrb[0].mxu0
    %440 = vdwg.mxu0
    %v442 = vsel %vm312, %v357, 0
    %444 = vmatprep.subr.mxu0 0.0
    %445 = vmatpush1.msra.mxu0 %v363
    %446 = vmatprep.subr.mxu0 0.0
    %447 = vmatpush1.msra.mxu0 %v364
    %448 = vmatprep.subr.mxu0 0.0
    %449 = vmatpush1.msra.mxu0 %v365
    %450 = vmatprep.subr.mxu0 0.0
    %451 = vmatpush1.msra.mxu0 %v366
    %452 = vmatprep.subr.mxu0 0.0
    %453 = vmatpush1.msra.mxu0 %v367
    %454 = vmatprep.subr.mxu0 0.0
    %455 = vmatpush1.msra.mxu0 0.0
    %456 = vmatprep.subr.mxu0 0.0
    %457 = vmatpush1.msra.mxu0 0.0
    %458 = vmatprep.subr.mxu0 0.0
    %459 = vmatpush1.msra.mxu0 0.0
    %460 = vmatprep.subr.mxu0 0.0
    %461 = vmatpush1.msra.mxu0 0.0
    %462 = vmatprep.subr.mxu0 0.0
    %463 = vmatpush1.msra.mxu0 0.0
    %464 = vmatprep.subr.mxu0 0.0
    %465 = vmatpush1.msra.mxu0 0.0
    %466 = vmatprep.subr.mxu0 0.0
    %467 = vmatpush1.msra.mxu0 0.0
    %468 = vmatprep.subr.mxu0 0.0
    %469 = vmatpush1.msra.mxu0 0.0
    %470 = vmatprep.subr.mxu0 0.0
    %471 = vmatpush1.msra.mxu0 0.0
    %472 = vmatprep.subr.mxu0 0.0
    %473 = vmatpush1.msra.mxu0 0.0
    %474 = vmatprep.subr.mxu0 0.0
    %475 = vmatpush1.msra.mxu0 0.0
    %476 = vmatprep.subr.mxu0 0.0
    %477 = vmatpush1.msra.mxu0 0.0
    %478 = vmatprep.subr.mxu0 0.0
    %479 = vmatpush1.msra.mxu0 0.0
    %480 = vmatprep.subr.mxu0 0.0
    %481 = vmatpush1.msra.mxu0 0.0
    %482 = vmatprep.subr.mxu0 0.0
    %483 = vmatpush1.msra.mxu0 0.0
    %484 = vmatprep.subr.mxu0 0.0
    %485 = vmatpush1.msra.mxu0 0.0
    %486 = vmatprep.subr.mxu0 0.0
    %487 = vmatpush1.msra.mxu0 0.0
    %488 = vmatprep.subr.mxu0 0.0
    %489 = vmatpush1.msra.mxu0 0.0
    %490 = vmatprep.subr.mxu0 0.0
    %491 = vmatpush1.msra.mxu0 0.0
    %492 = vmatprep.subr.mxu0 0.0
    %493 = vmatpush1.msra.mxu0 0.0
    %494 = vmatprep.subr.mxu0 0.0
    %495 = vmatpush1.msra.mxu0 0.0
    %496 = vmatprep.subr.mxu0 0.0
    %497 = vmatpush1.msra.mxu0 0.0
    %498 = vmatprep.subr.mxu0 0.0
    %499 = vmatpush1.msra.mxu0 0.0
    %500 = vmatprep.subr.mxu0 0.0
    %501 = vmatpush1.msra.mxu0 0.0
    %502 = vmatprep.subr.mxu0 0.0
    %503 = vmatpush1.msra.mxu0 0.0
    %504 = vmatprep.subr.mxu0 0.0
    %505 = vmatpush1.msra.mxu0 0.0
    %506 = vmatprep.subr.mxu0 0.0
    %507 = vmatpush1.msra.mxu0 0.0
    %508 = vmatprep.mubr.f32.mxu0 0.0
    %509 = vmatmul.mubr.f32.gmra.mrb[0].mxu0 %v442
    %v510 = vpop.f32.mrb[0].mxu0
    %v511 = vadd.f32 0.0, %v510
    %v512 = vpop.f32.mrb[0].mxu0
    %513 = vdwg.mxu0
    %v514 = vsel %vm244, %v438, 0.0
    %v515 = vrot.slane %v514, 4
    %v516 = vadd.f32 %v514, %v515
    %v517 = vrot.slane %v516, 2
    %v518 = vadd.f32 %v516, %v517
    %v519 = vrot.slane %v518, 1
    %v520 = vadd.f32 %v518, %v519
    %v521 = vsel %vm244, %v511, 0.0
    %v522 = vrot.slane %v521, 4
    %v523 = vadd.f32 %v521, %v522
    %v524 = vrot.slane %v523, 2
    %v525 = vadd.f32 %v523, %v524
    %v526 = vrot.slane %v525, 1
    %v527 = vadd.f32 %v525, %v526
    %v528 = vmul.f32 %v520, %v259
    %v529 = vmul.f32 %v527, %v259
    %v530 = vsub.f32 %v438, %v528
    %v531 = vsub.f32 %v511, %v529
    %v532 = vmul.f32 %v530, %v530
    %v533 = vmul.f32 %v531, %v531
    %v534 = vsel %vm244, %v532, 0.0
    %v535 = vrot.slane %v534, 4
    %v536 = vadd.f32 %v534, %v535
    %v537 = vrot.slane %v536, 2
    %v538 = vadd.f32 %v536, %v537
    %v539 = vrot.slane %v538, 1
    %v540 = vadd.f32 %v538, %v539
    %v541 = vsel %vm244, %v533, 0.0
    %v542 = vrot.slane %v541, 4
    %v543 = vadd.f32 %v541, %v542
    %v544 = vrot.slane %v543, 2
    %v545 = vadd.f32 %v543, %v544
    %v546 = vrot.slane %v545, 1
    %v547 = vadd.f32 %v545, %v546
    %v548 = vmul.f32 %v540, %v259
    %v549 = vmul.f32 %v547, %v259
    %v550 = vadd.f32 %v548, 1e-05
    %v551 = vadd.f32 %v549, 1e-05
    %v552 = vrsqrt.pop %v550
    %v553 = vrsqrt.pop %v551
    %v554 = vmul.f32 %v530, %v552
    %v555 = vmul.f32 %v531, %v553
    %v556 = vmin.f32 %v554, 20.0
    %v557 = vmin.f32 %v555, 20.0
    %v558 = vmul.f32 %v556, 1.442695
    %v559 = vpow.pop %v558
    %v560 = vmul.f32 %v557, 1.442695
    %v561 = vpow.pop %v560
    %v562 = vadd.f32 %v559, 1.0
    %v563 = vadd.f32 %v561, 1.0
    %v564 = vmul.f32 %v562, %v562
    %v565 = vmul.f32 %v563, %v563
    %v566 = vsub.f32 %v564, 1.0
    %v567 = vsub.f32 %v565, 1.0
    %v568 = vadd.f32 %v564, 1.0
    %v569 = vadd.f32 %v565, 1.0
    %v570 = vrcp.pop %v568
    %v571 = vrcp.pop %v569
    %v572 = vmul.f32 %v566, %v570
    %v573 = vmul.f32 %v567, %v571
    %vm574 = vcmp.gt.f32.partialorder %v554, 20.0
    %vm575 = vcmp.gt.f32.partialorder %v555, 20.0
    %v576 = vmul.f32 %v554, %v572
    %v577 = vmul.f32 %v555, %v573
    %v578 = vsel %vm574, %v554, %v576
    %v579 = vsel %vm575, %v555, %v577
    %580 = vst.msk [vmem:[#allocation4] sm:$0xff] %vm244, %v578
    %581 = vst.msk [vmem:[#allocation4 + $0x8] sm:$0xff] %vm244, %v579
    %v582 = vlaneseq
    %v583 = vshrl.u32 %v582, 7
    %v584 = vlaneseq
    %v585 = vand.u32 %v584, 127
    %v586 = vmul.u32 %v585, 2
    %vm587 = vcmp.eq.s32.totalorder %v583, %v586
    %v588 = vsel %vm587, 1, 0
    %v589 = vcvt.s32.f32 %v588
    %v590 = vadd.s32 %v586, 1
    %vm591 = vcmp.eq.s32.totalorder %v583, %v590
    %v592 = vsel %vm591, 1, 0
    %v593 = vcvt.s32.f32 %v592
    %v594 = vld [vmem:[%s3] sm:$0xff]
    %v595 = vld [vmem:[%s4] sm:$0xff]
    %v597 = vsel %vm244, %v578, 0
    %599 = vmatprep.subr.mxu0 0.0
    %600 = vmatpush1.msra.mxu0 %v589
    %601 = vmatprep.subr.mxu0 0.0
    %602 = vmatpush1.msra.mxu0 0.0
    %603 = vmatprep.subr.mxu0 0.0
    %604 = vmatpush1.msra.mxu0 0.0
    %605 = vmatprep.subr.mxu0 0.0
    %606 = vmatpush1.msra.mxu0 0.0
    %607 = vmatprep.subr.mxu0 0.0
    %608 = vmatpush1.msra.mxu0 0.0
    %609 = vmatprep.subr.mxu0 0.0
    %610 = vmatpush1.msra.mxu0 0.0
    %611 = vmatprep.subr.mxu0 0.0
    %612 = vmatpush1.msra.mxu0 0.0
    %613 = vmatprep.subr.mxu0 0.0
    %614 = vmatpush1.msra.mxu0 0.0
    %615 = vmatprep.subr.mxu0 0.0
    %616 = vmatpush1.msra.mxu0 0.0
    %617 = vmatprep.subr.mxu0 0.0
    %618 = vmatpush1.msra.mxu0 0.0
    %619 = vmatprep.subr.mxu0 0.0
    %620 = vmatpush1.msra.mxu0 0.0
    %621 = vmatprep.subr.mxu0 0.0
    %622 = vmatpush1.msra.mxu0 0.0
    %623 = vmatprep.subr.mxu0 0.0
    %624 = vmatpush1.msra.mxu0 0.0
    %625 = vmatprep.subr.mxu0 0.0
    %626 = vmatpush1.msra.mxu0 0.0
    %627 = vmatprep.subr.mxu0 0.0
    %628 = vmatpush1.msra.mxu0 0.0
    %629 = vmatprep.subr.mxu0 0.0
    %630 = vmatpush1.msra.mxu0 0.0
    %631 = vmatprep.subr.mxu0 0.0
    %632 = vmatpush1.msra.mxu0 0.0
    %633 = vmatprep.subr.mxu0 0.0
    %634 = vmatpush1.msra.mxu0 0.0
    %635 = vmatprep.subr.mxu0 0.0
    %636 = vmatpush1.msra.mxu0 0.0
    %637 = vmatprep.subr.mxu0 0.0
    %638 = vmatpush1.msra.mxu0 0.0
    %639 = vmatprep.subr.mxu0 0.0
    %640 = vmatpush1.msra.mxu0 0.0
    %641 = vmatprep.subr.mxu0 0.0
    %642 = vmatpush1.msra.mxu0 0.0
    %643 = vmatprep.subr.mxu0 0.0
    %644 = vmatpush1.msra.mxu0 0.0
    %645 = vmatprep.subr.mxu0 0.0
    %646 = vmatpush1.msra.mxu0 0.0
    %647 = vmatprep.subr.mxu0 0.0
    %648 = vmatpush1.msra.mxu0 0.0
    %649 = vmatprep.subr.mxu0 0.0
    %650 = vmatpush1.msra.mxu0 0.0
    %651 = vmatprep.subr.mxu0 0.0
    %652 = vmatpush1.msra.mxu0 0.0
    %653 = vmatprep.subr.mxu0 0.0
    %654 = vmatpush1.msra.mxu0 0.0
    %655 = vmatprep.subr.mxu0 0.0
    %656 = vmatpush1.msra.mxu0 0.0
    %657 = vmatprep.subr.mxu0 0.0
    %658 = vmatpush1.msra.mxu0 0.0
    %659 = vmatprep.subr.mxu0 0.0
    %660 = vmatpush1.msra.mxu0 0.0
    %661 = vmatprep.subr.mxu0 0.0
    %662 = vmatpush1.msra.mxu0 0.0
    %663 = vmatprep.mubr.f32.mxu0 0.0
    %664 = vmatmul.mubr.f32.gmra.mrb[0].mxu0 %v597
    %v665 = vpop.f32.mrb[0].mxu0
    %v666 = vadd.f32 0.0, %v665
    %v667 = vpop.f32.mrb[0].mxu0
    %668 = vdwg.mxu0
    %669 = vmatprep.subr.mxu0 0.0
    %670 = vmatpush1.msra.mxu0 %v593
    %671 = vmatprep.subr.mxu0 0.0
    %672 = vmatpush1.msra.mxu0 0.0
    %673 = vmatprep.subr.mxu0 0.0
    %674 = vmatpush1.msra.mxu0 0.0
    %675 = vmatprep.subr.mxu0 0.0
    %676 = vmatpush1.msra.mxu0 0.0
    %677 = vmatprep.subr.mxu0 0.0
    %678 = vmatpush1.msra.mxu0 0.0
    %679 = vmatprep.subr.mxu0 0.0
    %680 = vmatpush1.msra.mxu0 0.0
    %681 = vmatprep.subr.mxu0 0.0
    %682 = vmatpush1.msra.mxu0 0.0
    %683 = vmatprep.subr.mxu0 0.0
    %684 = vmatpush1.msra.mxu0 0.0
    %685 = vmatprep.subr.mxu0 0.0
    %686 = vmatpush1.msra.mxu0 0.0
    %687 = vmatprep.subr.mxu0 0.0
    %688 = vmatpush1.msra.mxu0 0.0
    %689 = vmatprep.subr.mxu0 0.0
    %690 = vmatpush1.msra.mxu0 0.0
    %691 = vmatprep.subr.mxu0 0.0
    %692 = vmatpush1.msra.mxu0 0.0
    %693 = vmatprep.subr.mxu0 0.0
    %694 = vmatpush1.msra.mxu0 0.0
    %695 = vmatprep.subr.mxu0 0.0
    %696 = vmatpush1.msra.mxu0 0.0
    %697 = vmatprep.subr.mxu0 0.0
    %698 = vmatpush1.msra.mxu0 0.0
    %699 = vmatprep.subr.mxu0 0.0
    %700 = vmatpush1.msra.mxu0 0.0
    %701 = vmatprep.subr.mxu0 0.0
    %702 = vmatpush1.msra.mxu0 0.0
    %703 = vmatprep.subr.mxu0 0.0
    %704 = vmatpush1.msra.mxu0 0.0
    %705 = vmatprep.subr.mxu0 0.0
    %706 = vmatpush1.msra.mxu0 0.0
    %707 = vmatprep.subr.mxu0 0.0
    %708 = vmatpush1.msra.mxu0 0.0
    %709 = vmatprep.subr.mxu0 0.0
    %710 = vmatpush1.msra.mxu0 0.0
    %711 = vmatprep.subr.mxu0 0.0
    %712 = vmatpush1.msra.mxu0 0.0
    %713 = vmatprep.subr.mxu0 0.0
    %714 = vmatpush1.msra.mxu0 0.0
    %715 = vmatprep.subr.mxu0 0.0
    %716 = vmatpush1.msra.mxu0 0.0
    %717 = vmatprep.subr.mxu0 0.0
    %718 = vmatpush1.msra.mxu0 0.0
    %719 = vmatprep.subr.mxu0 0.0
    %720 = vmatpush1.msra.mxu0 0.0
    %721 = vmatprep.subr.mxu0 0.0
    %722 = vmatpush1.msra.mxu0 0.0
    %723 = vmatprep.subr.mxu0 0.0
    %724 = vmatpush1.msra.mxu0 0.0
    %725 = vmatprep.subr.mxu0 0.0
    %726 = vmatpush1.msra.mxu0 0.0
    %727 = vmatprep.subr.mxu0 0.0
    %728 = vmatpush1.msra.mxu0 0.0
    %729 = vmatprep.subr.mxu0 0.0
    %730 = vmatpush1.msra.mxu0 0.0
    %731 = vmatprep.subr.mxu0 0.0
    %732 = vmatpush1.msra.mxu0 0.0
    %733 = vmatprep.mubr.f32.mxu0 0.0
    %734 = vmatmul.mubr.f32.gmra.mrb[0].mxu0 %v597
    %v735 = vpop.f32.mrb[0].mxu0
    %v736 = vadd.f32 0.0, %v735
    %v737 = vpop.f32.mrb[0].mxu0
    %738 = vdwg.mxu0
    %v740 = vsel %vm244, %v595, 0
    %742 = vmatprep.subr.mxu0 0.0
    %743 = vmatpush1.msra.mxu0 %v736
    %744 = vmatprep.subr.mxu0 0.0
    %745 = vmatpush1.msra.mxu0 0.0
    %746 = vmatprep.subr.mxu0 0.0
    %747 = vmatpush1.msra.mxu0 0.0
    %748 = vmatprep.subr.mxu0 0.0
    %749 = vmatpush1.msra.mxu0 0.0
    %750 = vmatprep.subr.mxu0 0.0
    %751 = vmatpush1.msra.mxu0 0.0
    %752 = vmatprep.subr.mxu0 0.0
    %753 = vmatpush1.msra.mxu0 0.0
    %754 = vmatprep.subr.mxu0 0.0
    %755 = vmatpush1.msra.mxu0 0.0
    %756 = vmatprep.subr.mxu0 0.0
    %757 = vmatpush1.msra.mxu0 0.0
    %758 = vmatprep.subr.mxu0 0.0
    %759 = vmatpush1.msra.mxu0 0.0
    %760 = vmatprep.subr.mxu0 0.0
    %761 = vmatpush1.msra.mxu0 0.0
    %762 = vmatprep.subr.mxu0 0.0
    %763 = vmatpush1.msra.mxu0 0.0
    %764 = vmatprep.subr.mxu0 0.0
    %765 = vmatpush1.msra.mxu0 0.0
    %766 = vmatprep.subr.mxu0 0.0
    %767 = vmatpush1.msra.mxu0 0.0
    %768 = vmatprep.subr.mxu0 0.0
    %769 = vmatpush1.msra.mxu0 0.0
    %770 = vmatprep.subr.mxu0 0.0
    %771 = vmatpush1.msra.mxu0 0.0
    %772 = vmatprep.subr.mxu0 0.0
    %773 = vmatpush1.msra.mxu0 0.0
    %774 = vmatprep.subr.mxu0 0.0
    %775 = vmatpush1.msra.mxu0 0.0
    %776 = vmatprep.subr.mxu0 0.0
    %777 = vmatpush1.msra.mxu0 0.0
    %778 = vmatprep.subr.mxu0 0.0
    %779 = vmatpush1.msra.mxu0 0.0
    %780 = vmatprep.subr.mxu0 0.0
    %781 = vmatpush1.msra.mxu0 0.0
    %782 = vmatprep.subr.mxu0 0.0
    %783 = vmatpush1.msra.mxu0 0.0
    %784 = vmatprep.subr.mxu0 0.0
    %785 = vmatpush1.msra.mxu0 0.0
    %786 = vmatprep.subr.mxu0 0.0
    %787 = vmatpush1.msra.mxu0 0.0
    %788 = vmatprep.subr.mxu0 0.0
    %789 = vmatpush1.msra.mxu0 0.0
    %790 = vmatprep.subr.mxu0 0.0
    %791 = vmatpush1.msra.mxu0 0.0
    %792 = vmatprep.subr.mxu0 0.0
    %793 = vmatpush1.msra.mxu0 0.0
    %794 = vmatprep.subr.mxu0 0.0
    %795 = vmatpush1.msra.mxu0 0.0
    %796 = vmatprep.subr.mxu0 0.0
    %797 = vmatpush1.msra.mxu0 0.0
    %798 = vmatprep.subr.mxu0 0.0
    %799 = vmatpush1.msra.mxu0 0.0
    %800 = vmatprep.subr.mxu0 0.0
    %801 = vmatpush1.msra.mxu0 0.0
    %802 = vmatprep.subr.mxu0 0.0
    %803 = vmatpush1.msra.mxu0 0.0
    %804 = vmatprep.subr.mxu0 0.0
    %805 = vmatpush1.msra.mxu0 0.0
    %806 = vmatprep.mubr.f32.mxu0 0.0
    %807 = vmatmul.mubr.f32.gmra.mrb[0].mxu0 %v740
    %v808 = vpop.f32.mrb[0].mxu0
    %v809 = vadd.f32 0.0, %v808
    %v810 = vpop.f32.mrb[0].mxu0
    %811 = vdwg.mxu0
    %v813 = vsel %vm244, %v594, 0
    %815 = vmatprep.subr.mxu0 0.0
    %816 = vmatpush1.msra.mxu0 %v666
    %817 = vmatprep.subr.mxu0 0.0
    %818 = vmatpush1.msra.mxu0 0.0
    %819 = vmatprep.subr.mxu0 0.0
    %820 = vmatpush1.msra.mxu0 0.0
    %821 = vmatprep.subr.mxu0 0.0
    %822 = vmatpush1.msra.mxu0 0.0
    %823 = vmatprep.subr.mxu0 0.0
    %824 = vmatpush1.msra.mxu0 0.0
    %825 = vmatprep.subr.mxu0 0.0
    %826 = vmatpush1.msra.mxu0 0.0
    %827 = vmatprep.subr.mxu0 0.0
    %828 = vmatpush1.msra.mxu0 0.0
    %829 = vmatprep.subr.mxu0 0.0
    %830 = vmatpush1.msra.mxu0 0.0
    %831 = vmatprep.subr.mxu0 0.0
    %832 = vmatpush1.msra.mxu0 0.0
    %833 = vmatprep.subr.mxu0 0.0
    %834 = vmatpush1.msra.mxu0 0.0
    %835 = vmatprep.subr.mxu0 0.0
    %836 = vmatpush1.msra.mxu0 0.0
    %837 = vmatprep.subr.mxu0 0.0
    %838 = vmatpush1.msra.mxu0 0.0
    %839 = vmatprep.subr.mxu0 0.0
    %840 = vmatpush1.msra.mxu0 0.0
    %841 = vmatprep.subr.mxu0 0.0
    %842 = vmatpush1.msra.mxu0 0.0
    %843 = vmatprep.subr.mxu0 0.0
    %844 = vmatpush1.msra.mxu0 0.0
    %845 = vmatprep.subr.mxu0 0.0
    %846 = vmatpush1.msra.mxu0 0.0
    %847 = vmatprep.subr.mxu0 0.0
    %848 = vmatpush1.msra.mxu0 0.0
    %849 = vmatprep.subr.mxu0 0.0
    %850 = vmatpush1.msra.mxu0 0.0
    %851 = vmatprep.subr.mxu0 0.0
    %852 = vmatpush1.msra.mxu0 0.0
    %853 = vmatprep.subr.mxu0 0.0
    %854 = vmatpush1.msra.mxu0 0.0
    %855 = vmatprep.subr.mxu0 0.0
    %856 = vmatpush1.msra.mxu0 0.0
    %857 = vmatprep.subr.mxu0 0.0
    %858 = vmatpush1.msra.mxu0 0.0
    %859 = vmatprep.subr.mxu0 0.0
    %860 = vmatpush1.msra.mxu0 0.0
    %861 = vmatprep.subr.mxu0 0.0
    %862 = vmatpush1.msra.mxu0 0.0
    %863 = vmatprep.subr.mxu0 0.0
    %864 = vmatpush1.msra.mxu0 0.0
    %865 = vmatprep.subr.mxu0 0.0
    %866 = vmatpush1.msra.mxu0 0.0
    %867 = vmatprep.subr.mxu0 0.0
    %868 = vmatpush1.msra.mxu0 0.0
    %869 = vmatprep.subr.mxu0 0.0
    %870 = vmatpush1.msra.mxu0 0.0
    %871 = vmatprep.subr.mxu0 0.0
    %872 = vmatpush1.msra.mxu0 0.0
    %873 = vmatprep.subr.mxu0 0.0
    %874 = vmatpush1.msra.mxu0 0.0
    %875 = vmatprep.subr.mxu0 0.0
    %876 = vmatpush1.msra.mxu0 0.0
    %877 = vmatprep.subr.mxu0 0.0
    %878 = vmatpush1.msra.mxu0 0.0
    %879 = vmatprep.mubr.f32.mxu0 0.0
    %880 = vmatmul.mubr.f32.gmra.mrb[0].mxu0 %v813
    %v881 = vpop.f32.mrb[0].mxu0
    %v882 = vadd.f32 %v809, %v881
    %v883 = vpop.f32.mrb[0].mxu0
    %884 = vdwg.mxu0
    %v886 = vsel %vm244, %v579, 0
    %888 = vmatprep.subr.mxu0 0.0
    %889 = vmatpush1.msra.mxu0 %v589
    %890 = vmatprep.subr.mxu0 0.0
    %891 = vmatpush1.msra.mxu0 0.0
    %892 = vmatprep.subr.mxu0 0.0
    %893 = vmatpush1.msra.mxu0 0.0
    %894 = vmatprep.subr.mxu0 0.0
    %895 = vmatpush1.msra.mxu0 0.0
    %896 = vmatprep.subr.mxu0 0.0
    %897 = vmatpush1.msra.mxu0 0.0
    %898 = vmatprep.subr.mxu0 0.0
    %899 = vmatpush1.msra.mxu0 0.0
    %900 = vmatprep.subr.mxu0 0.0
    %901 = vmatpush1.msra.mxu0 0.0
    %902 = vmatprep.subr.mxu0 0.0
    %903 = vmatpush1.msra.mxu0 0.0
    %904 = vmatprep.subr.mxu0 0.0
    %905 = vmatpush1.msra.mxu0 0.0
    %906 = vmatprep.subr.mxu0 0.0
    %907 = vmatpush1.msra.mxu0 0.0
    %908 = vmatprep.subr.mxu0 0.0
    %909 = vmatpush1.msra.mxu0 0.0
    %910 = vmatprep.subr.mxu0 0.0
    %911 = vmatpush1.msra.mxu0 0.0
    %912 = vmatprep.subr.mxu0 0.0
    %913 = vmatpush1.msra.mxu0 0.0
    %914 = vmatprep.subr.mxu0 0.0
    %915 = vmatpush1.msra.mxu0 0.0
    %916 = vmatprep.subr.mxu0 0.0
    %917 = vmatpush1.msra.mxu0 0.0
    %918 = vmatprep.subr.mxu0 0.0
    %919 = vmatpush1.msra.mxu0 0.0
    %920 = vmatprep.subr.mxu0 0.0
    %921 = vmatpush1.msra.mxu0 0.0
    %922 = vmatprep.subr.mxu0 0.0
    %923 = vmatpush1.msra.mxu0 0.0
    %924 = vmatprep.subr.mxu0 0.0
    %925 = vmatpush1.msra.mxu0 0.0
    %926 = vmatprep.subr.mxu0 0.0
    %927 = vmatpush1.msra.mxu0 0.0
    %928 = vmatprep.subr.mxu0 0.0
    %929 = vmatpush1.msra.mxu0 0.0
    %930 = vmatprep.subr.mxu0 0.0
    %931 = vmatpush1.msra.mxu0 0.0
    %932 = vmatprep.subr.mxu0 0.0
    %933 = vmatpush1.msra.mxu0 0.0
    %934 = vmatprep.subr.mxu0 0.0
    %935 = vmatpush1.msra.mxu0 0.0
    %936 = vmatprep.subr.mxu0 0.0
    %937 = vmatpush1.msra.mxu0 0.0
    %938 = vmatprep.subr.mxu0 0.0
    %939 = vmatpush1.msra.mxu0 0.0
    %940 = vmatprep.subr.mxu0 0.0
    %941 = vmatpush1.msra.mxu0 0.0
    %942 = vmatprep.subr.mxu0 0.0
    %943 = vmatpush1.msra.mxu0 0.0
    %944 = vmatprep.subr.mxu0 0.0
    %945 = vmatpush1.msra.mxu0 0.0
    %946 = vmatprep.subr.mxu0 0.0
    %947 = vmatpush1.msra.mxu0 0.0
    %948 = vmatprep.subr.mxu0 0.0
    %949 = vmatpush1.msra.mxu0 0.0
    %950 = vmatprep.subr.mxu0 0.0
    %951 = vmatpush1.msra.mxu0 0.0
    %952 = vmatprep.mubr.f32.mxu0 0.0
    %953 = vmatmul.mubr.f32.gmra.mrb[0].mxu0 %v886
    %v954 = vpop.f32.mrb[0].mxu0
    %v955 = vadd.f32 0.0, %v954
    %v956 = vpop.f32.mrb[0].mxu0
    %957 = vdwg.mxu0
    %958 = vmatprep.subr.mxu0 0.0
    %959 = vmatpush1.msra.mxu0 %v593
    %960 = vmatprep.subr.mxu0 0.0
    %961 = vmatpush1.msra.mxu0 0.0
    %962 = vmatprep.subr.mxu0 0.0
    %963 = vmatpush1.msra.mxu0 0.0
    %964 = vmatprep.subr.mxu0 0.0
    %965 = vmatpush1.msra.mxu0 0.0
    %966 = vmatprep.subr.mxu0 0.0
    %967 = vmatpush1.msra.mxu0 0.0
    %968 = vmatprep.subr.mxu0 0.0
    %969 = vmatpush1.msra.mxu0 0.0
    %970 = vmatprep.subr.mxu0 0.0
    %971 = vmatpush1.msra.mxu0 0.0
    %972 = vmatprep.subr.mxu0 0.0
    %973 = vmatpush1.msra.mxu0 0.0
    %974 = vmatprep.subr.mxu0 0.0
    %975 = vmatpush1.msra.mxu0 0.0
    %976 = vmatprep.subr.mxu0 0.0
    %977 = vmatpush1.msra.mxu0 0.0
    %978 = vmatprep.subr.mxu0 0.0
    %979 = vmatpush1.msra.mxu0 0.0
    %980 = vmatprep.subr.mxu0 0.0
    %981 = vmatpush1.msra.mxu0 0.0
    %982 = vmatprep.subr.mxu0 0.0
    %983 = vmatpush1.msra.mxu0 0.0
    %984 = vmatprep.subr.mxu0 0.0
    %985 = vmatpush1.msra.mxu0 0.0
    %986 = vmatprep.subr.mxu0 0.0
    %987 = vmatpush1.msra.mxu0 0.0
    %988 = vmatprep.subr.mxu0 0.0
    %989 = vmatpush1.msra.mxu0 0.0
    %990 = vmatprep.subr.mxu0 0.0
    %991 = vmatpush1.msra.mxu0 0.0
    %992 = vmatprep.subr.mxu0 0.0
    %993 = vmatpush1.msra.mxu0 0.0
    %994 = vmatprep.subr.mxu0 0.0
    %995 = vmatpush1.msra.mxu0 0.0
    %996 = vmatprep.subr.mxu0 0.0
    %997 = vmatpush1.msra.mxu0 0.0
    %998 = vmatprep.subr.mxu0 0.0
    %999 = vmatpush1.msra.mxu0 0.0
    %1000 = vmatprep.subr.mxu0 0.0
    %1001 = vmatpush1.msra.mxu0 0.0
    %1002 = vmatprep.subr.mxu0 0.0
    %1003 = vmatpush1.msra.mxu0 0.0
    %1004 = vmatprep.subr.mxu0 0.0
    %1005 = vmatpush1.msra.mxu0 0.0
    %1006 = vmatprep.subr.mxu0 0.0
    %1007 = vmatpush1.msra.mxu0 0.0
    %1008 = vmatprep.subr.mxu0 0.0
    %1009 = vmatpush1.msra.mxu0 0.0
    %1010 = vmatprep.subr.mxu0 0.0
    %1011 = vmatpush1.msra.mxu0 0.0
    %1012 = vmatprep.subr.mxu0 0.0
    %1013 = vmatpush1.msra.mxu0 0.0
    %1014 = vmatprep.subr.mxu0 0.0
    %1015 = vmatpush1.msra.mxu0 0.0
    %1016 = vmatprep.subr.mxu0 0.0
    %1017 = vmatpush1.msra.mxu0 0.0
    %1018 = vmatprep.subr.mxu0 0.0
    %1019 = vmatpush1.msra.mxu0 0.0
    %1020 = vmatprep.subr.mxu0 0.0
    %1021 = vmatpush1.msra.mxu0 0.0
    %1022 = vmatprep.mubr.f32.mxu0 0.0
    %1023 = vmatmul.mubr.f32.gmra.mrb[0].mxu0 %v886
    %v1024 = vpop.f32.mrb[0].mxu0
    %v1025 = vadd.f32 0.0, %v1024
    %v1026 = vpop.f32.mrb[0].mxu0
    %1027 = vdwg.mxu0
    %1028 = vmatprep.subr.mxu0 0.0
    %1029 = vmatpush1.msra.mxu0 %v1025
    %1030 = vmatprep.subr.mxu0 0.0
    %1031 = vmatpush1.msra.mxu0 0.0
    %1032 = vmatprep.subr.mxu0 0.0
    %1033 = vmatpush1.msra.mxu0 0.0
    %1034 = vmatprep.subr.mxu0 0.0
    %1035 = vmatpush1.msra.mxu0 0.0
    %1036 = vmatprep.subr.mxu0 0.0
    %1037 = vmatpush1.msra.mxu0 0.0
    %1038 = vmatprep.subr.mxu0 0.0
    %1039 = vmatpush1.msra.mxu0 0.0
    %1040 = vmatprep.subr.mxu0 0.0
    %1041 = vmatpush1.msra.mxu0 0.0
    %1042 = vmatprep.subr.mxu0 0.0
    %1043 = vmatpush1.msra.mxu0 0.0
    %1044 = vmatprep.subr.mxu0 0.0
    %1045 = vmatpush1.msra.mxu0 0.0
    %1046 = vmatprep.subr.mxu0 0.0
    %1047 = vmatpush1.msra.mxu0 0.0
    %1048 = vmatprep.subr.mxu0 0.0
    %1049 = vmatpush1.msra.mxu0 0.0
    %1050 = vmatprep.subr.mxu0 0.0
    %1051 = vmatpush1.msra.mxu0 0.0
    %1052 = vmatprep.subr.mxu0 0.0
    %1053 = vmatpush1.msra.mxu0 0.0
    %1054 = vmatprep.subr.mxu0 0.0
    %1055 = vmatpush1.msra.mxu0 0.0
    %1056 = vmatprep.subr.mxu0 0.0
    %1057 = vmatpush1.msra.mxu0 0.0
    %1058 = vmatprep.subr.mxu0 0.0
    %1059 = vmatpush1.msra.mxu0 0.0
    %1060 = vmatprep.subr.mxu0 0.0
    %1061 = vmatpush1.msra.mxu0 0.0
    %1062 = vmatprep.subr.mxu0 0.0
    %1063 = vmatpush1.msra.mxu0 0.0
    %1064 = vmatprep.subr.mxu0 0.0
    %1065 = vmatpush1.msra.mxu0 0.0
    %1066 = vmatprep.subr.mxu0 0.0
    %1067 = vmatpush1.msra.mxu0 0.0
    %1068 = vmatprep.subr.mxu0 0.0
    %1069 = vmatpush1.msra.mxu0 0.0
    %1070 = vmatprep.subr.mxu0 0.0
    %1071 = vmatpush1.msra.mxu0 0.0
    %1072 = vmatprep.subr.mxu0 0.0
    %1073 = vmatpush1.msra.mxu0 0.0
    %1074 = vmatprep.subr.mxu0 0.0
    %1075 = vmatpush1.msra.mxu0 0.0
    %1076 = vmatprep.subr.mxu0 0.0
    %1077 = vmatpush1.msra.mxu0 0.0
    %1078 = vmatprep.subr.mxu0 0.0
    %1079 = vmatpush1.msra.mxu0 0.0
    %1080 = vmatprep.subr.mxu0 0.0
    %1081 = vmatpush1.msra.mxu0 0.0
    %1082 = vmatprep.subr.mxu0 0.0
    %1083 = vmatpush1.msra.mxu0 0.0
    %1084 = vmatprep.subr.mxu0 0.0
    %1085 = vmatpush1.msra.mxu0 0.0
    %1086 = vmatprep.subr.mxu0 0.0
    %1087 = vmatpush1.msra.mxu0 0.0
    %1088 = vmatprep.subr.mxu0 0.0
    %1089 = vmatpush1.msra.mxu0 0.0
    %1090 = vmatprep.subr.mxu0 0.0
    %1091 = vmatpush1.msra.mxu0 0.0
    %1092 = vmatprep.mubr.f32.mxu0 0.0
    %1093 = vmatmul.mubr.f32.gmra.mrb[0].mxu0 %v740
    %v1094 = vpop.f32.mrb[0].mxu0
    %v1095 = vadd.f32 0.0, %v1094
    %v1096 = vpop.f32.mrb[0].mxu0
    %1097 = vdwg.mxu0
    %1098 = vmatprep.subr.mxu0 0.0
    %1099 = vmatpush1.msra.mxu0 %v955
    %1100 = vmatprep.subr.mxu0 0.0
    %1101 = vmatpush1.msra.mxu0 0.0
    %1102 = vmatprep.subr.mxu0 0.0
    %1103 = vmatpush1.msra.mxu0 0.0
    %1104 = vmatprep.subr.mxu0 0.0
    %1105 = vmatpush1.msra.mxu0 0.0
    %1106 = vmatprep.subr.mxu0 0.0
    %1107 = vmatpush1.msra.mxu0 0.0
    %1108 = vmatprep.subr.mxu0 0.0
    %1109 = vmatpush1.msra.mxu0 0.0
    %1110 = vmatprep.subr.mxu0 0.0
    %1111 = vmatpush1.msra.mxu0 0.0
    %1112 = vmatprep.subr.mxu0 0.0
    %1113 = vmatpush1.msra.mxu0 0.0
    %1114 = vmatprep.subr.mxu0 0.0
    %1115 = vmatpush1.msra.mxu0 0.0
    %1116 = vmatprep.subr.mxu0 0.0
    %1117 = vmatpush1.msra.mxu0 0.0
    %1118 = vmatprep.subr.mxu0 0.0
    %1119 = vmatpush1.msra.mxu0 0.0
    %1120 = vmatprep.subr.mxu0 0.0
    %1121 = vmatpush1.msra.mxu0 0.0
    %1122 = vmatprep.subr.mxu0 0.0
    %1123 = vmatpush1.msra.mxu0 0.0
    %1124 = vmatprep.subr.mxu0 0.0
    %1125 = vmatpush1.msra.mxu0 0.0
    %1126 = vmatprep.subr.mxu0 0.0
    %1127 = vmatpush1.msra.mxu0 0.0
    %1128 = vmatprep.subr.mxu0 0.0
    %1129 = vmatpush1.msra.mxu0 0.0
    %1130 = vmatprep.subr.mxu0 0.0
    %1131 = vmatpush1.msra.mxu0 0.0
    %1132 = vmatprep.subr.mxu0 0.0
    %1133 = vmatpush1.msra.mxu0 0.0
    %1134 = vmatprep.subr.mxu0 0.0
    %1135 = vmatpush1.msra.mxu0 0.0
    %1136 = vmatprep.subr.mxu0 0.0
    %1137 = vmatpush1.msra.mxu0 0.0
    %1138 = vmatprep.subr.mxu0 0.0
    %1139 = vmatpush1.msra.mxu0 0.0
    %1140 = vmatprep.subr.mxu0 0.0
    %1141 = vmatpush1.msra.mxu0 0.0
    %1142 = vmatprep.subr.mxu0 0.0
    %1143 = vmatpush1.msra.mxu0 0.0
    %1144 = vmatprep.subr.mxu0 0.0
    %1145 = vmatpush1.msra.mxu0 0.0
    %1146 = vmatprep.subr.mxu0 0.0
    %1147 = vmatpush1.msra.mxu0 0.0
    %1148 = vmatprep.subr.mxu0 0.0
    %1149 = vmatpush1.msra.mxu0 0.0
    %1150 = vmatprep.subr.mxu0 0.0
    %1151 = vmatpush1.msra.mxu0 0.0
    %1152 = vmatprep.subr.mxu0 0.0
    %1153 = vmatpush1.msra.mxu0 0.0
    %1154 = vmatprep.subr.mxu0 0.0
    %1155 = vmatpush1.msra.mxu0 0.0
    %1156 = vmatprep.subr.mxu0 0.0
    %1157 = vmatpush1.msra.mxu0 0.0
    %1158 = vmatprep.subr.mxu0 0.0
    %1159 = vmatpush1.msra.mxu0 0.0
    %1160 = vmatprep.subr.mxu0 0.0
    %1161 = vmatpush1.msra.mxu0 0.0
    %1162 = vmatprep.mubr.f32.mxu0 0.0
    %1163 = vmatmul.mubr.f32.gmra.mrb[0].mxu0 %v813
    %v1164 = vpop.f32.mrb[0].mxu0
    %v1165 = vadd.f32 %v1095, %v1164
    %v1166 = vpop.f32.mrb[0].mxu0
    %1167 = vdwg.mxu0
    %vm1168 = vcmask 31744
    %v1169 = vsel %vm1168, %v882, 0.0
    %v1170 = vsel %vm1168, %v1165, 0.0
    %v1171 = vadd.f32 %v1169, %v1170
    %1172 = vadd.xlane.f32.xlu0 %v1171
    %v1173 = vpop.xlane.xlu0 %1172
    %v1174 = vmul.f32 %v1173, %v259
    %v1175 = vsub.f32 %v882, %v1174
    %v1176 = vsub.f32 %v1165, %v1174
    %v1177 = vmul.f32 %v1175, %v1175
    %v1178 = vmul.f32 %v1176, %v1176
    %v1179 = vsel %vm1168, %v1177, 0.0
    %v1180 = vsel %vm1168, %v1178, 0.0
    %v1181 = vadd.f32 %v1179, %v1180
    %1182 = vadd.xlane.f32.xlu0 %v1181
    %v1183 = vpop.xlane.xlu0 %1182
    %v1184 = vmul.f32 %v1183, %v259
    %v1185 = vadd.f32 %v1184, 1e-05
    %v1186 = vrsqrt.pop %v1185
    %v1187 = vmul.f32 %v1175, %v1186
    %v1188 = vmul.f32 %v1176, %v1186
    %v1189 = vmin.f32 %v1187, 20.0
    %v1190 = vmin.f32 %v1188, 20.0
    %v1191 = vmul.f32 %v1189, 1.442695
    %v1192 = vpow.pop %v1191
    %v1193 = vmul.f32 %v1190, 1.442695
    %v1194 = vpow.pop %v1193
    %v1195 = vadd.f32 %v1192, 1.0
    %v1196 = vadd.f32 %v1194, 1.0
    %v1197 = vmul.f32 %v1195, %v1195
    %v1198 = vmul.f32 %v1196, %v1196
    %v1199 = vsub.f32 %v1197, 1.0
    %v1200 = vsub.f32 %v1198, 1.0
    %v1201 = vadd.f32 %v1197, 1.0
    %v1202 = vadd.f32 %v1198, 1.0
    %v1203 = vrcp.pop %v1201
    %v1204 = vrcp.pop %v1202
    %v1205 = vmul.f32 %v1199, %v1203
    %v1206 = vmul.f32 %v1200, %v1204
    %vm1207 = vcmp.gt.f32.partialorder %v1187, 20.0
    %vm1208 = vcmp.gt.f32.partialorder %v1188, 20.0
    %v1209 = vmul.f32 %v1187, %v1205
    %v1210 = vmul.f32 %v1188, %v1206
    %v1211 = vsel %vm1207, %v1187, %v1209
    %v1212 = vsel %vm1208, %v1188, %v1210
    %1213 = vst.msk [vmem:[%s5] sm:$0xff] %vm1168, %v1211
    %1214 = vst.msk [vmem:[%s5 + $0x8] sm:$0xff] %vm1168, %v1212
    // Predicated region
    $region22: #{mode_encoder_block_forward.1} parent=1 // pred_check
      _
    $region23: #{mode_encoder_block_forward.1} parent=1 // pred_check_branch
      %1216 = sbr.rel (0) target = $region25
    $region24: #{mode_encoder_block_forward.1} parent=1 // pred_region
      _
    $region25: #{mode_encoder_block_forward.1} parent=1 // pred_fallthru
      _
    // Predicated region
    $region26: #{mode_encoder_block_forward.1} parent=1 // pred_check
      _
    $region27: #{mode_encoder_block_forward.1} parent=1 // pred_check_branch
      %1218 = sbr.rel (0) target = $region29
    $region28: #{mode_encoder_block_forward.1} parent=1 // pred_region
      %s1220 = ssub.s32 256, 256
      %1221 = vsyncadd [#allocation5], %s1220
      %s1222 = sshll.u32 [#allocation4], 4
      %s1223 = int_to_ptr.vmem [resolvable:$true] %s1222
      %1228 = dma.vmem_to_hbm [thread:$0]  %s1223, 256, %s6, [#allocation5], 128, 128, 8
    $region29: #{mode_encoder_block_forward.1} parent=1 // pred_fallthru
      _
    // Predicated region
    $region30: #{mode_encoder_block_forward.1} parent=1 // pred_check
      _
    $region31: #{mode_encoder_block_forward.1} parent=1 // pred_check_branch
      %1230 = sbr.rel (0) target = $region33
    $region32: #{mode_encoder_block_forward.1} parent=1 // pred_region
      _
    $region33: #{mode_encoder_block_forward.1} parent=1 // pred_fallthru
      _
    // Predicated region
    $region34: #{mode_encoder_block_forward.1} parent=1 // pred_check
      _
    $region35: #{mode_encoder_block_forward.1} parent=1 // pred_check_branch
      %1232 = sbr.rel (0) target = $region37
    $region36: #{mode_encoder_block_forward.1} parent=1 // pred_region
      %1233 = dma.done [#allocation5], 256
    $region37: #{mode_encoder_block_forward.1} parent=1 // pred_fallthru
      _
    %1234 = vsyncpa [#allocation5], 1

</llo_original>
